<compile_context>
chip_gen: v7x
topology: tpu7x:2x2x1
jax: 0.10.0
libtpu: 0.0.40
codegen_flags: <defaults>
</compile_context>

<pallas_src>
import functools

import jax
import jax.numpy as jnp
import numpy as np
from jax.experimental import pallas as pl
from jax.experimental.pallas import tpu as pltpu

EPS = 1e-5                        # PyTorch InstanceNorm2d default
VMEM_LIMIT_BYTES = 56 * 1024 * 1024   # < 64 MiB/TC on v7x; ample on v5e/v6e
VMEM_TARGET_BYTES = 40 * 1024 * 1024  # working-set target used by the tiler


def _round_up(x, m):
    return (x + m - 1) // m * m


# ------------------------- single-pass fused kernel ------------------------- #
# One whole sample per grid step.  No mid HBM round trip; x read once.
def _fused_kernel(x_ref, t_ref, wsp1_ref, bsp1_ref, w1_ref, c1_ref,
                  wsp2_ref, bsp2_ref, wc_ref, cc_ref, o_ref):
    # x_ref   : (1, H, W, Cp)    f32
    # t_ref   : (1, H, W, 9*Cin) f32   im2col'd bound taps
    # wsp1_ref: (9*Cin, 2*Cp)    f32   fused spade1 [wmap|bmap]
    # wsp2_ref: (9*Cin, 4*Cp)    f32   fused [w2|b2|wres|bres]
    # w1_ref  : (Cp, Cp) bf16 ; wc_ref: (2*Cp, Cp) bf16 (conv2 ; conv_res)
    _, H, W, Cp = x_ref.shape
    K9 = t_ref.shape[-1]
    rows = H * W
    inv = 1.0 / rows

    x = x_ref[0].reshape(rows, Cp)
    mean_x = jnp.sum(x, axis=0, keepdims=True) * inv
    xc = x - mean_x
    var_x = jnp.sum(xc * xc, axis=0, keepdims=True) * inv
    xn = xc * jax.lax.rsqrt(var_x + EPS)                      # IN(x), reused twice

    taps = t_ref[0].reshape(rows, K9)

    maps1 = jnp.dot(taps, wsp1_ref[...],
                    preferred_element_type=jnp.float32) + bsp1_ref[...]
    act1 = jnp.maximum(xn * maps1[:, :Cp] + maps1[:, Cp:], 0.0)
    mid = jnp.dot(act1.astype(jnp.bfloat16), w1_ref[...],
                  preferred_element_type=jnp.float32) + c1_ref[...]

    mean_m = jnp.sum(mid, axis=0, keepdims=True) * inv
    mc = mid - mean_m
    var_m = jnp.sum(mc * mc, axis=0, keepdims=True) * inv
    midn = mc * jax.lax.rsqrt(var_m + EPS)

    maps2 = jnp.dot(taps, wsp2_ref[...],
                    preferred_element_type=jnp.float32) + bsp2_ref[...]
    a2 = jnp.maximum(midn * maps2[:, 0 * Cp:1 * Cp] + maps2[:, 1 * Cp:2 * Cp], 0.0)
    ar = jnp.maximum(xn * maps2[:, 2 * Cp:3 * Cp] + maps2[:, 3 * Cp:4 * Cp], 0.0)
    acat = jnp.concatenate([a2, ar], axis=1).astype(jnp.bfloat16)   # (rows, 2*Cp)
    out = jnp.dot(acat, wc_ref[...],
                  preferred_element_type=jnp.float32) + cc_ref[...]
    o_ref[0] = out.reshape(H, W, Cp)


# --------------------------- two-pass kernel: pass 1 ------------------------ #
# mid = conv1(relu(IN(x) * spade1_wmap + spade1_bmap)); per-tile [sum, M2] of mid.
def _pass1_kernel(x_ref, t_ref, sx_ref, wsp_ref, bsp_ref, w1_ref, c1_ref,
                  mid_ref, pstat_ref):
    # mid_ref  : (1, th, W, Cp) bf16 ; pstat_ref: (1, 1, 2, Cp) f32
    _, th, W, Cp = x_ref.shape
    K9 = t_ref.shape[-1]
    rows = th * W

    x = x_ref[0].reshape(rows, Cp)
    xn = (x - sx_ref[0, 0:1, :]) * sx_ref[0, 1:2, :]          # reuse x stats

    taps = t_ref[0].reshape(rows, K9)
    maps = jnp.dot(taps, wsp_ref[...],
                   preferred_element_type=jnp.float32) + bsp_ref[...]
    act = jnp.maximum(xn * maps[:, :Cp] + maps[:, Cp:], 0.0)
    mid = jnp.dot(act.astype(jnp.bfloat16), w1_ref[...],
                  preferred_element_type=jnp.float32) + c1_ref[...]

    mid_ref[0] = mid.reshape(th, W, Cp).astype(mid_ref.dtype)  # bf16 store

    # Per-tile centered partials (Welford-style combine happens in the wrapper).
    s1 = jnp.sum(mid, axis=0, keepdims=True)
    mu = s1 * (1.0 / rows)
    d = mid - mu
    m2 = jnp.sum(d * d, axis=0, keepdims=True)
    pstat_ref[0, 0] = jnp.concatenate([s1, m2], axis=0)


# --------------------------- two-pass kernel: pass 2 ------------------------ #
# out = conv2(relu(IN(mid)*w2+b2)) + conv_res(relu(IN(x)*wr+br))
def _pass2_kernel(mid_ref, x_ref, t_ref, sx_ref, sm_ref,
                  wsp_ref, bsp_ref, wc_ref, cc_ref, o_ref):
    _, th, W, Cp = o_ref.shape
    K9 = t_ref.shape[-1]
    rows = th * W

    mid = mid_ref[0].reshape(rows, Cp).astype(jnp.float32)
    x = x_ref[0].reshape(rows, Cp)
    midn = (mid - sm_ref[0, 0:1, :]) * sm_ref[0, 1:2, :]
    xn = (x - sx_ref[0, 0:1, :]) * sx_ref[0, 1:2, :]

    taps = t_ref[0].reshape(rows, K9)
    maps = jnp.dot(taps, wsp_ref[...],
                   preferred_element_type=jnp.float32) + bsp_ref[...]
    a2 = jnp.maximum(midn * maps[:, 0 * Cp:1 * Cp] + maps[:, 1 * Cp:2 * Cp], 0.0)
    ar = jnp.maximum(xn * maps[:, 2 * Cp:3 * Cp] + maps[:, 3 * Cp:4 * Cp], 0.0)
    acat = jnp.concatenate([a2, ar], axis=1).astype(jnp.bfloat16)
    out = jnp.dot(acat, wc_ref[...],
                  preferred_element_type=jnp.float32) + cc_ref[...]
    o_ref[0] = out.reshape(th, W, Cp)


# --------------------------------- wrapper ---------------------------------- #
def _pick_tile_rows(h, w, cpad, cin):
    # Pass-2 per-pixel VMEM estimate: double-buffered blocks (mid bf16, x f32,
    # taps f32, out f32) + f32 temporaries (maps/xn/midn/a2/ar/acat/out).
    per_px = 68 * cpad + 72 * cin
    budget_px = max(w, VMEM_TARGET_BYTES // per_px)
    best, best_aligned = 1, None
    for d in range(1, h + 1):
        if h % d:
            continue
        if d * w > budget_px:
            break
        best = d
        if (d * w) % 8 == 0:        # keep the (th,W,Cp)->(rows,Cp) reshape free
            best_aligned = d
    return best_aligned if best_aligned is not None else best


@functools.partial(jax.jit, static_argnames=("tile_rows", "force_two_pass"))
def resblk_spade_pallas(x_nhwc, bound_nhwc, params, tile_rows=None,
                        force_two_pass=False):
    n, h, w, planes = x_nhwc.shape
    cin = bound_nhwc.shape[-1]
    hw = h * w
    cpad = _round_up(planes, 128)             # lane-dense channel dim
    k9 = 9 * cin
    cp_extra = cpad - planes
    f32, bf16 = jnp.float32, jnp.bfloat16

    # ---- activations: channel-pad only when necessary (skip the HBM copy) ----
    x_p = x_nhwc.astype(f32)
    if cp_extra:
        x_p = jnp.pad(x_p, ((0, 0), (0, 0), (0, 0), (0, cp_extra)))

    # ---- bound "tap" tensor: spatial pad + im2col fused into one build ----
    b_pad = jnp.pad(bound_nhwc.astype(f32), ((0, 0), (1, 1), (1, 1), (0, 0)))
    taps = jnp.concatenate(
        [b_pad[:, kh:kh + h, kw:kw + w, :] for kh in range(3) for kw in range(3)],
        axis=-1)                                              # (N, H, W, 9*cin) f32

    # ---- fused / zero-padded weights (built once) ----
    def pad_out(a):              # pad last (output-channel) axis to cpad
        if not cp_extra:
            return a
        return jnp.pad(a, [(0, 0)] * (a.ndim - 1) + [(0, cp_extra)])

    def pad_vec(v):
        return jnp.pad(v, ((0, cp_extra),)) if cp_extra else v

    def pad_mat(m):
        return jnp.pad(m, ((0, cp_extra), (0, cp_extra))) if cp_extra else m

    def pad_rows(a, cval=0.0):
        return (jnp.pad(a, ((0, 0), (0, cp_extra)), constant_values=cval)
                if cp_extra else a)

    wsp1 = jnp.concatenate([pad_out(params["spade1_w_w"]),
                            pad_out(params["spade1_b_w"])],
                           axis=-1).reshape(k9, 2 * cpad).astype(f32)
    bsp1 = jnp.concatenate([pad_vec(params["spade1_w_bias"]),
                            pad_vec(params["spade1_b_bias"])])[None, :].astype(f32)
    w1 = pad_mat(params["conv1_w"]).astype(bf16)
    c1 = pad_vec(params["conv1_bias"])[None, :].astype(f32)

    wsp2 = jnp.concatenate([pad_out(params["spade2_w_w"]),
                            pad_out(params["spade2_b_w"]),
                            pad_out(params["spade_res_w_w"]),
                            pad_out(params["spade_res_b_w"])],
                           axis=-1).reshape(k9, 4 * cpad).astype(f32)
    bsp2 = jnp.concatenate([pad_vec(params["spade2_w_bias"]),
                            pad_vec(params["spade2_b_bias"]),
                            pad_vec(params["spade_res_w_bias"]),
                            pad_vec(params["spade_res_b_bias"])])[None, :].astype(f32)
    wc = jnp.concatenate([pad_mat(params["conv2_w"]),
                          pad_mat(params["conv_res_w"])], axis=0).astype(bf16)
    cc = (pad_vec(params["conv2_bias"]) +
          pad_vec(params["conv_res_bias"]))[None, :].astype(f32)

    # -------------------- single-pass path (sample fits VMEM) --------------- #
    per_px_single = 72 * cpad + 72 * cin
    single_ok = (hw * per_px_single <= 36 * 1024 * 1024)
    if single_ok and not force_two_pass:
        out_p = pl.pallas_call(
            _fused_kernel,
            out_shape=jax.ShapeDtypeStruct((n, h, w, cpad), f32),
            grid=(n,),
            in_specs=[
                pl.BlockSpec((1, h, w, cpad), lambda b: (b, 0, 0, 0)),     # x
                pl.BlockSpec((1, h, w, k9), lambda b: (b, 0, 0, 0)),       # taps
                pl.BlockSpec((k9, 2 * cpad), lambda b: (0, 0)),            # spade1 W
                pl.BlockSpec((1, 2 * cpad), lambda b: (0, 0)),             # spade1 b
                pl.BlockSpec((cpad, cpad), lambda b: (0, 0)),              # conv1 W
                pl.BlockSpec((1, cpad), lambda b: (0, 0)),                 # conv1 b
                pl.BlockSpec((k9, 4 * cpad), lambda b: (0, 0)),            # spade2/res W
                pl.BlockSpec((1, 4 * cpad), lambda b: (0, 0)),             # spade2/res b
                pl.BlockSpec((2 * cpad, cpad), lambda b: (0, 0)),          # conv2|conv_res
                pl.BlockSpec((1, cpad), lambda b: (0, 0)),                 # fused bias
            ],
            out_specs=pl.BlockSpec((1, h, w, cpad), lambda b: (b, 0, 0, 0)),
            compiler_params=pltpu.CompilerParams(
                dimension_semantics=("parallel",),
                vmem_limit_bytes=VMEM_LIMIT_BYTES),
            cost_estimate=pl.CostEstimate(
                flops=int(2 * n * hw * (6 * k9 * cpad + 3 * cpad * cpad)),
                transcendentals=0,
                bytes_accessed=int(n * hw * (8 * cpad + 4 * k9))),
        )(x_p, taps, wsp1, bsp1, w1, c1, wsp2, bsp2, wc, cc)
        return out_p[..., :planes]

    # ------------------------- two-pass tiled path -------------------------- #
    th = tile_rows if tile_rows is not None else _pick_tile_rows(h, w, cpad, cin)
    assert h % th == 0, "tile_rows must divide H"
    n_t = h // th

    # x instance-norm stats: tiny JAX reduction, reused by spade1 and spade_res.
    mean_x = jnp.mean(x_nhwc, axis=(1, 2))
    rstd_x = jax.lax.rsqrt(jnp.var(x_nhwc, axis=(1, 2)) + EPS)
    stats_x = jnp.stack([pad_rows(mean_x), pad_rows(rstd_x, 1.0)],
                        axis=1).astype(f32)                        # (N, 2, Cp)

    cparams = pltpu.CompilerParams(
        dimension_semantics=("parallel", "parallel"),
        vmem_limit_bytes=VMEM_LIMIT_BYTES)

    # ---------------------------- pass 1 ---------------------------------- #
    mid, pstat = pl.pallas_call(
        _pass1_kernel,
        out_shape=(jax.ShapeDtypeStruct((n, h, w, cpad), bf16),
                   jax.ShapeDtypeStruct((n, n_t, 2, cpad), f32)),
        grid=(n, n_t),
        in_specs=[
            pl.BlockSpec((1, th, w, cpad), lambda b, i: (b, i, 0, 0)),     # x
            pl.BlockSpec((1, th, w, k9), lambda b, i: (b, i, 0, 0)),       # taps
            pl.BlockSpec((1, 2, cpad), lambda b, i: (b, 0, 0)),            # x stats
            pl.BlockSpec((k9, 2 * cpad), lambda b, i: (0, 0)),             # spade1 W
            pl.BlockSpec((1, 2 * cpad), lambda b, i: (0, 0)),              # spade1 b
            pl.BlockSpec((cpad, cpad), lambda b, i: (0, 0)),               # conv1 W
            pl.BlockSpec((1, cpad), lambda b, i: (0, 0)),                  # conv1 b
        ],
        out_specs=(
            pl.BlockSpec((1, th, w, cpad), lambda b, i: (b, i, 0, 0)),     # mid (bf16)
            pl.BlockSpec((1, 1, 2, cpad), lambda b, i: (b, i, 0, 0)),      # partial stats
        ),
        compiler_params=cparams,
        cost_estimate=pl.CostEstimate(
            flops=int(2 * n * hw * (2 * k9 * cpad + cpad * cpad)),
            transcendentals=0,
            bytes_accessed=int(n * hw * (4 * cpad + 4 * k9 + 2 * cpad))),
    )(x_p, taps, stats_x, wsp1, bsp1, w1, c1)

    # Welford-style parallel combine of per-tile [sum, centered M2].
    rows_t = th * w
    s = pstat[:, :, 0, :]
    m2 = pstat[:, :, 1, :]
    mean_m = jnp.sum(s, axis=1) / hw
    mean_t = s / rows_t
    m2_tot = jnp.sum(m2, axis=1) + rows_t * jnp.sum(
        (mean_t - mean_m[:, None, :]) ** 2, axis=1)
    var_m = jnp.maximum(m2_tot / hw, 0.0)
    stats_m = jnp.stack([mean_m, jax.lax.rsqrt(var_m + EPS)], axis=1).astype(f32)

    # ---------------------------- pass 2 ---------------------------------- #
    out_p = pl.pallas_call(
        _pass2_kernel,
        out_shape=jax.ShapeDtypeStruct((n, h, w, cpad), f32),
        grid=(n, n_t),
        in_specs=[
            pl.BlockSpec((1, th, w, cpad), lambda b, i: (b, i, 0, 0)),     # mid (bf16)
            pl.BlockSpec((1, th, w, cpad), lambda b, i: (b, i, 0, 0)),     # x
            pl.BlockSpec((1, th, w, k9), lambda b, i: (b, i, 0, 0)),       # taps
            pl.BlockSpec((1, 2, cpad), lambda b, i: (b, 0, 0)),            # x stats
            pl.BlockSpec((1, 2, cpad), lambda b, i: (b, 0, 0)),            # mid stats
            pl.BlockSpec((k9, 4 * cpad), lambda b, i: (0, 0)),             # spade2/res W
            pl.BlockSpec((1, 4 * cpad), lambda b, i: (0, 0)),              # spade2/res b
            pl.BlockSpec((2 * cpad, cpad), lambda b, i: (0, 0)),           # conv2|conv_res
            pl.BlockSpec((1, cpad), lambda b, i: (0, 0)),                  # fused bias
        ],
        out_specs=pl.BlockSpec((1, th, w, cpad), lambda b, i: (b, i, 0, 0)),
        compiler_params=cparams,
        cost_estimate=pl.CostEstimate(
            flops=int(2 * n * hw * (4 * k9 * cpad + 2 * cpad * cpad)),
            transcendentals=0,
            bytes_accessed=int(n * hw * (10 * cpad + 4 * k9))),
    )(mid, x_p, taps, stats_x, stats_m, wsp2, bsp2, wc, cc)

    return out_p[..., :planes]


# --------------------------- pure-JAX reference ----------------------------- #
def resblk_spade_reference(x_nhwc, bound_nhwc, params):
    def conv3x3(v, w_hwio, bias):
        y = jax.lax.conv_general_dilated(
            v, w_hwio, window_strides=(1, 1), padding="SAME",
            dimension_numbers=("NHWC", "HWIO", "NHWC"))
        return y + bias

    def instance_norm(v):
        m = jnp.mean(v, axis=(1, 2), keepdims=True)
        var = jnp.mean((v - m) ** 2, axis=(1, 2), keepdims=True)
        return (v - m) * jax.lax.rsqrt(var + EPS)

    def conv1x1(v, w, bias):
        return jnp.einsum("nhwc,cd->nhwd", v, w) + bias

    def spade(v, prefix):
        wmap = conv3x3(bound_nhwc, params[prefix + "_w_w"], params[prefix + "_w_bias"])
        bmap = conv3x3(bound_nhwc, params[prefix + "_b_w"], params[prefix + "_b_bias"])
        return instance_norm(v) * wmap + bmap

    out = spade(x_nhwc, "spade1")
    out = jnp.maximum(out, 0.0)
    out = conv1x1(out, params["conv1_w"], params["conv1_bias"])
    out = spade(out, "spade2")
    out = jnp.maximum(out, 0.0)
    out = conv1x1(out, params["conv2_w"], params["conv2_bias"])
    res = spade(x_nhwc, "spade_res")
    res = jnp.maximum(res, 0.0)
    res = conv1x1(res, params["conv_res_w"], params["conv_res_bias"])
    return out + res


# -------------------------------- params ------------------------------------ #
def init_params(key, input_nc, planes):
    keys = jax.random.split(key, 18)
    kit = iter(keys)
    p = {}
    for name in ("spade1_w", "spade1_b", "spade2_w", "spade2_b",
                 "spade_res_w", "spade_res_b"):
        p[name + "_w"] = 0.1 * jax.random.normal(next(kit), (3, 3, input_nc, planes), jnp.float32)
        p[name + "_bias"] = 0.1 * jax.random.normal(next(kit), (planes,), jnp.float32)
    for name in ("conv1", "conv2", "conv_res"):
        p[name + "_w"] = 0.1 * jax.random.normal(next(kit), (planes, planes), jnp.float32)
        p[name + "_bias"] = 0.1 * jax.random.normal(next(kit), (planes,), jnp.float32)
    return p


if __name__ == "__main__":
    N, input_nc, planes, H, W = 2, 3, 4, 16, 16

    key = jax.random.PRNGKey(0)
    kx, kb, kp = jax.random.split(key, 3)
    # PyTorch inputs are NCHW; we generate NHWC directly (documented layout).
    x = jax.random.normal(kx, (N, H, W, planes), jnp.float32)
    bound = jax.random.normal(kb, (N, H, W, input_nc), jnp.float32)
    params = init_params(kp, input_nc, planes)

    ref = jax.block_until_ready(resblk_spade_reference(x, bound, params))

    # Single-pass fused path (auto-selected: a 16x16 sample easily fits VMEM).
    out_fused = jax.block_until_ready(resblk_spade_pallas(x, bound, params))
    np.testing.assert_allclose(np.asarray(out_fused), np.asarray(ref),
                               rtol=5e-2, atol=5e-2)

    # Two-pass tiled path (used for large images): force it, 2 HW tiles/image.
    out_tiled = jax.block_until_ready(
        resblk_spade_pallas(x, bound, params, tile_rows=8, force_two_pass=True))
    np.testing.assert_allclose(np.asarray(out_tiled), np.asarray(ref),
                               rtol=5e-2, atol=5e-2)

    print("KERNEL_OK")
</pallas_src>

<mosaic_0001>
module attributes {stable_mosaic.version = 11 : i64} {
  func.func @_fused_kernel(%arg0: i32, %arg1: memref<1x16x16x128xf32, #tpu.memory_space<vmem>>, %arg2: memref<1x16x16x27xf32, #tpu.memory_space<vmem>>, %arg3: memref<27x256xf32, #tpu.memory_space<vmem>>, %arg4: memref<1x256xf32, #tpu.memory_space<vmem>>, %arg5: memref<128x128xbf16, #tpu.memory_space<vmem>>, %arg6: memref<1x128xf32, #tpu.memory_space<vmem>>, %arg7: memref<27x512xf32, #tpu.memory_space<vmem>>, %arg8: memref<1x512xf32, #tpu.memory_space<vmem>>, %arg9: memref<256x128xbf16, #tpu.memory_space<vmem>>, %arg10: memref<1x128xf32, #tpu.memory_space<vmem>>, %arg11: memref<1x16x16x128xf32, #tpu.memory_space<vmem>>) attributes {dimension_semantics = [#tpu.dimension_semantics<parallel>], iteration_bounds = array<i64: 2>, scalar_prefetch = 0 : i64, scratch_operands = 0 : i64, tpu.core_type = #tpu.core_type<tc>, window_params = [{transform_indices = @transform_0, window_bounds = array<i64: 1, 16, 16, 128>}, {transform_indices = @transform_1, window_bounds = array<i64: 1, 16, 16, 27>}, {pipeline_mode = #tpu.pipeline_mode<synchronous>, transform_indices = @transform_2, window_bounds = array<i64: 27, 256>}, {pipeline_mode = #tpu.pipeline_mode<synchronous>, transform_indices = @transform_3, window_bounds = array<i64: 1, 256>}, {pipeline_mode = #tpu.pipeline_mode<synchronous>, transform_indices = @transform_4, window_bounds = array<i64: 128, 128>}, {pipeline_mode = #tpu.pipeline_mode<synchronous>, transform_indices = @transform_5, window_bounds = array<i64: 1, 128>}, {pipeline_mode = #tpu.pipeline_mode<synchronous>, transform_indices = @transform_6, window_bounds = array<i64: 27, 512>}, {pipeline_mode = #tpu.pipeline_mode<synchronous>, transform_indices = @transform_7, window_bounds = array<i64: 1, 512>}, {pipeline_mode = #tpu.pipeline_mode<synchronous>, transform_indices = @transform_8, window_bounds = array<i64: 256, 128>}, {pipeline_mode = #tpu.pipeline_mode<synchronous>, transform_indices = @transform_9, window_bounds = array<i64: 1, 128>}, {transform_indices = @transform_10, window_bounds = array<i64: 1, 16, 16, 128>}]} {
    %c0 = arith.constant 0 : index
    %c0_0 = arith.constant 0 : index
    %c0_1 = arith.constant 0 : index
    %c0_2 = arith.constant 0 : index
    %0 = vector.load %arg1[%c0, %c0_0, %c0_1, %c0_2] : memref<1x16x16x128xf32, #tpu.memory_space<vmem>>, vector<1x16x16x128xf32>
    %1 = vector.shape_cast %0 : vector<1x16x16x128xf32> to vector<16x16x128xf32>
    %2 = vector.shape_cast %1 : vector<16x16x128xf32> to vector<256x128xf32>
    %cst = arith.constant dense<0.000000e+00> : vector<128xf32>
    %3 = vector.multi_reduction <add>, %2, %cst [0] : vector<256x128xf32> to vector<128xf32>
    %4 = vector.shape_cast %3 : vector<128xf32> to vector<1x128xf32>
    %cst_3 = arith.constant 3.906250e-03 : f32
    %5 = vector.broadcast %cst_3 : f32 to vector<1x128xf32>
    %6 = arith.mulf %4, %5 : vector<1x128xf32>
    %7 = vector.broadcast %6 : vector<1x128xf32> to vector<256x128xf32>
    %8 = arith.subf %2, %7 : vector<256x128xf32>
    %9 = arith.mulf %8, %8 : vector<256x128xf32>
    %cst_4 = arith.constant dense<0.000000e+00> : vector<128xf32>
    %10 = vector.multi_reduction <add>, %9, %cst_4 [0] : vector<256x128xf32> to vector<128xf32>
    %11 = vector.shape_cast %10 : vector<128xf32> to vector<1x128xf32>
    %cst_5 = arith.constant 3.906250e-03 : f32
    %12 = vector.broadcast %cst_5 : f32 to vector<1x128xf32>
    %13 = arith.mulf %11, %12 : vector<1x128xf32>
    %cst_6 = arith.constant 9.99999974E-6 : f32
    %14 = vector.broadcast %cst_6 : f32 to vector<1x128xf32>
    %15 = arith.addf %13, %14 : vector<1x128xf32>
    %16 = math.rsqrt %15 : vector<1x128xf32>
    %17 = vector.broadcast %16 : vector<1x128xf32> to vector<256x128xf32>
    %18 = arith.mulf %8, %17 : vector<256x128xf32>
    %c0_7 = arith.constant 0 : index
    %c0_8 = arith.constant 0 : index
    %c0_9 = arith.constant 0 : index
    %c0_10 = arith.constant 0 : index
    %19 = vector.load %arg2[%c0_7, %c0_8, %c0_9, %c0_10] : memref<1x16x16x27xf32, #tpu.memory_space<vmem>>, vector<1x16x16x27xf32>
    %20 = vector.shape_cast %19 : vector<1x16x16x27xf32> to vector<16x16x27xf32>
    %21 = vector.shape_cast %20 : vector<16x16x27xf32> to vector<256x27xf32>
    %c0_11 = arith.constant 0 : index
    %c0_12 = arith.constant 0 : index
    %22 = vector.load %arg3[%c0_11, %c0_12] : memref<27x256xf32, #tpu.memory_space<vmem>>, vector<27x256xf32>
    %cst_13 = arith.constant dense<0.000000e+00> : vector<256x256xf32>
    %23 = tpu.matmul %21, %22, %cst_13 {dimension_numbers = #tpu.dot_dimension_numbers<[1], [0], [0], [1], [0, 0, 1, 1], [], []>} : vector<256x27xf32>, vector<27x256xf32>, vector<256x256xf32> -> vector<256x256xf32>
    %c0_14 = arith.constant 0 : index
    %c0_15 = arith.constant 0 : index
    %24 = vector.load %arg4[%c0_14, %c0_15] : memref<1x256xf32, #tpu.memory_space<vmem>>, vector<1x256xf32>
    %25 = vector.broadcast %24 : vector<1x256xf32> to vector<256x256xf32>
    %26 = arith.addf %23, %25 : vector<256x256xf32>
    %27 = vector.extract_strided_slice %26 {offsets = [0, 0], sizes = [256, 128], strides = [1, 1]} : vector<256x256xf32> to vector<256x128xf32>
    %28 = arith.mulf %18, %27 : vector<256x128xf32>
    %29 = vector.extract_strided_slice %26 {offsets = [0, 128], sizes = [256, 128], strides = [1, 1]} : vector<256x256xf32> to vector<256x128xf32>
    %30 = arith.addf %28, %29 : vector<256x128xf32>
    %cst_16 = arith.constant 0.000000e+00 : f32
    %31 = vector.broadcast %cst_16 : f32 to vector<256x128xf32>
    %32 = arith.maximumf %30, %31 : vector<256x128xf32>
    %33 = arith.truncf %32 : vector<256x128xf32> to vector<256x128xbf16>
    %c0_17 = arith.constant 0 : index
    %c0_18 = arith.constant 0 : index
    %34 = vector.load %arg5[%c0_17, %c0_18] : memref<128x128xbf16, #tpu.memory_space<vmem>>, vector<128x128xbf16>
    %cst_19 = arith.constant dense<0.000000e+00> : vector<256x128xf32>
    %35 = tpu.matmul %33, %34, %cst_19 {dimension_numbers = #tpu.dot_dimension_numbers<[1], [0], [0], [1], [0, 0, 1, 1], [], []>} : vector<256x128xbf16>, vector<128x128xbf16>, vector<256x128xf32> -> vector<256x128xf32>
    %c0_20 = arith.constant 0 : index
    %c0_21 = arith.constant 0 : index
    %36 = vector.load %arg6[%c0_20, %c0_21] : memref<1x128xf32, #tpu.memory_space<vmem>>, vector<1x128xf32>
    %37 = vector.broadcast %36 : vector<1x128xf32> to vector<256x128xf32>
    %38 = arith.addf %35, %37 : vector<256x128xf32>
    %cst_22 = arith.constant dense<0.000000e+00> : vector<128xf32>
    %39 = vector.multi_reduction <add>, %38, %cst_22 [0] : vector<256x128xf32> to vector<128xf32>
    %40 = vector.shape_cast %39 : vector<128xf32> to vector<1x128xf32>
    %cst_23 = arith.constant 3.906250e-03 : f32
    %41 = vector.broadcast %cst_23 : f32 to vector<1x128xf32>
    %42 = arith.mulf %40, %41 : vector<1x128xf32>
    %43 = vector.broadcast %42 : vector<1x128xf32> to vector<256x128xf32>
    %44 = arith.subf %38, %43 : vector<256x128xf32>
    %45 = arith.mulf %44, %44 : vector<256x128xf32>
    %cst_24 = arith.constant dense<0.000000e+00> : vector<128xf32>
    %46 = vector.multi_reduction <add>, %45, %cst_24 [0] : vector<256x128xf32> to vector<128xf32>
    %47 = vector.shape_cast %46 : vector<128xf32> to vector<1x128xf32>
    %cst_25 = arith.constant 3.906250e-03 : f32
    %48 = vector.broadcast %cst_25 : f32 to vector<1x128xf32>
    %49 = arith.mulf %47, %48 : vector<1x128xf32>
    %cst_26 = arith.constant 9.99999974E-6 : f32
    %50 = vector.broadcast %cst_26 : f32 to vector<1x128xf32>
    %51 = arith.addf %49, %50 : vector<1x128xf32>
    %52 = math.rsqrt %51 : vector<1x128xf32>
    %53 = vector.broadcast %52 : vector<1x128xf32> to vector<256x128xf32>
    %54 = arith.mulf %44, %53 : vector<256x128xf32>
    %c0_27 = arith.constant 0 : index
    %c0_28 = arith.constant 0 : index
    %55 = vector.load %arg7[%c0_27, %c0_28] : memref<27x512xf32, #tpu.memory_space<vmem>>, vector<27x512xf32>
    %cst_29 = arith.constant dense<0.000000e+00> : vector<256x512xf32>
    %56 = tpu.matmul %21, %55, %cst_29 {dimension_numbers = #tpu.dot_dimension_numbers<[1], [0], [0], [1], [0, 0, 1, 1], [], []>} : vector<256x27xf32>, vector<27x512xf32>, vector<256x512xf32> -> vector<256x512xf32>
    %c0_30 = arith.constant 0 : index
    %c0_31 = arith.constant 0 : index
    %57 = vector.load %arg8[%c0_30, %c0_31] : memref<1x512xf32, #tpu.memory_space<vmem>>, vector<1x512xf32>
    %58 = vector.broadcast %57 : vector<1x512xf32> to vector<256x512xf32>
    %59 = arith.addf %56, %58 : vector<256x512xf32>
    %60 = vector.extract_strided_slice %59 {offsets = [0, 0], sizes = [256, 128], strides = [1, 1]} : vector<256x512xf32> to vector<256x128xf32>
    %61 = arith.mulf %54, %60 : vector<256x128xf32>
    %62 = vector.extract_strided_slice %59 {offsets = [0, 128], sizes = [256, 128], strides = [1, 1]} : vector<256x512xf32> to vector<256x128xf32>
    %63 = arith.addf %61, %62 : vector<256x128xf32>
    %cst_32 = arith.constant 0.000000e+00 : f32
    %64 = vector.broadcast %cst_32 : f32 to vector<256x128xf32>
    %65 = arith.maximumf %63, %64 : vector<256x128xf32>
    %66 = vector.extract_strided_slice %59 {offsets = [0, 256], sizes = [256, 128], strides = [1, 1]} : vector<256x512xf32> to vector<256x128xf32>
    %67 = arith.mulf %18, %66 : vector<256x128xf32>
    %68 = vector.extract_strided_slice %59 {offsets = [0, 384], sizes = [256, 128], strides = [1, 1]} : vector<256x512xf32> to vector<256x128xf32>
    %69 = arith.addf %67, %68 : vector<256x128xf32>
    %cst_33 = arith.constant 0.000000e+00 : f32
    %70 = vector.broadcast %cst_33 : f32 to vector<256x128xf32>
    %71 = arith.maximumf %69, %70 : vector<256x128xf32>
    %72 = tpu.concatenate %65, %71 in 1 : vector<256x128xf32>, vector<256x128xf32> -> vector<256x256xf32>
    %73 = arith.truncf %72 : vector<256x256xf32> to vector<256x256xbf16>
    %c0_34 = arith.constant 0 : index
    %c0_35 = arith.constant 0 : index
    %74 = vector.load %arg9[%c0_34, %c0_35] : memref<256x128xbf16, #tpu.memory_space<vmem>>, vector<256x128xbf16>
    %cst_36 = arith.constant dense<0.000000e+00> : vector<256x128xf32>
    %75 = tpu.matmul %73, %74, %cst_36 {dimension_numbers = #tpu.dot_dimension_numbers<[1], [0], [0], [1], [0, 0, 1, 1], [], []>} : vector<256x256xbf16>, vector<256x128xbf16>, vector<256x128xf32> -> vector<256x128xf32>
    %c0_37 = arith.constant 0 : index
    %c0_38 = arith.constant 0 : index
    %76 = vector.load %arg10[%c0_37, %c0_38] : memref<1x128xf32, #tpu.memory_space<vmem>>, vector<1x128xf32>
    %77 = vector.broadcast %76 : vector<1x128xf32> to vector<256x128xf32>
    %78 = arith.addf %75, %77 : vector<256x128xf32>
    %79 = vector.shape_cast %78 : vector<256x128xf32> to vector<16x16x128xf32>
    %c0_39 = arith.constant 0 : index
    %c0_40 = arith.constant 0 : index
    %c0_41 = arith.constant 0 : index
    %c0_42 = arith.constant 0 : index
    %80 = vector.load %arg11[%c0_39, %c0_40, %c0_41, %c0_42] : memref<1x16x16x128xf32, #tpu.memory_space<vmem>>, vector<1x16x16x128xf32>
    %81 = vector.shape_cast %80 : vector<1x16x16x128xf32> to vector<16x16x128xf32>
    %82 = vector.shape_cast %79 : vector<16x16x128xf32> to vector<1x16x16x128xf32>
    tpu.vector_store %arg11[%c0_39, %c0_40, %c0_41, %c0_42], %82 {strides = array<i32>} : memref<1x16x16x128xf32, #tpu.memory_space<vmem>>, vector<1x16x16x128xf32>,
    return
  }
  func.func @transform_0(%arg0: i32) -> (i32, i32, i32, i32) {
    %c0_i32 = arith.constant 0 : i32
    %c0_i32_0 = arith.constant 0 : i32
    %c0_i32_1 = arith.constant 0 : i32
    %c0_i32_2 = arith.constant 0 : i32
    return %arg0, %c0_i32, %c0_i32_0, %c0_i32_1 : i32, i32, i32, i32
  }
  func.func @transform_1(%arg0: i32) -> (i32, i32, i32, i32) {
    %c0_i32 = arith.constant 0 : i32
    %c0_i32_0 = arith.constant 0 : i32
    %c0_i32_1 = arith.constant 0 : i32
    %c0_i32_2 = arith.constant 0 : i32
    return %arg0, %c0_i32, %c0_i32_0, %c0_i32_1 : i32, i32, i32, i32
  }
  func.func @transform_2(%arg0: i32) -> (i32, i32) {
    %c0_i32 = arith.constant 0 : i32
    %c0_i32_0 = arith.constant 0 : i32
    %c0_i32_1 = arith.constant 0 : i32
    return %c0_i32, %c0_i32_0 : i32, i32
  }
  func.func @transform_3(%arg0: i32) -> (i32, i32) {
    %c0_i32 = arith.constant 0 : i32
    %c0_i32_0 = arith.constant 0 : i32
    %c0_i32_1 = arith.constant 0 : i32
    return %c0_i32, %c0_i32_0 : i32, i32
  }
  func.func @transform_4(%arg0: i32) -> (i32, i32) {
    %c0_i32 = arith.constant 0 : i32
    %c0_i32_0 = arith.constant 0 : i32
    %c0_i32_1 = arith.constant 0 : i32
    return %c0_i32, %c0_i32_0 : i32, i32
  }
  func.func @transform_5(%arg0: i32) -> (i32, i32) {
    %c0_i32 = arith.constant 0 : i32
    %c0_i32_0 = arith.constant 0 : i32
    %c0_i32_1 = arith.constant 0 : i32
    return %c0_i32, %c0_i32_0 : i32, i32
  }
  func.func @transform_6(%arg0: i32) -> (i32, i32) {
    %c0_i32 = arith.constant 0 : i32
    %c0_i32_0 = arith.constant 0 : i32
    %c0_i32_1 = arith.constant 0 : i32
    return %c0_i32, %c0_i32_0 : i32, i32
  }
  func.func @transform_7(%arg0: i32) -> (i32, i32) {
    %c0_i32 = arith.constant 0 : i32
    %c0_i32_0 = arith.constant 0 : i32
    %c0_i32_1 = arith.constant 0 : i32
    return %c0_i32, %c0_i32_0 : i32, i32
  }
  func.func @transform_8(%arg0: i32) -> (i32, i32) {
    %c0_i32 = arith.constant 0 : i32
    %c0_i32_0 = arith.constant 0 : i32
    %c0_i32_1 = arith.constant 0 : i32
    return %c0_i32, %c0_i32_0 : i32, i32
  }
  func.func @transform_9(%arg0: i32) -> (i32, i32) {
    %c0_i32 = arith.constant 0 : i32
    %c0_i32_0 = arith.constant 0 : i32
    %c0_i32_1 = arith.constant 0 : i32
    return %c0_i32, %c0_i32_0 : i32, i32
  }
  func.func @transform_10(%arg0: i32) -> (i32, i32, i32, i32) {
    %c0_i32 = arith.constant 0 : i32
    %c0_i32_0 = arith.constant 0 : i32
    %c0_i32_1 = arith.constant 0 : i32
    %c0_i32_2 = arith.constant 0 : i32
    return %arg0, %c0_i32, %c0_i32_0, %c0_i32_1 : i32, i32, i32, i32
  }
}

</mosaic_0001>

<llo_original>
// kernel: resblk_spade_pallas.1
$region0: #{resblk_spade_pallas.1}
  #allocation0 [shape = 'u32[]', space=smem, size = 0x4, offset = 0x4, fixed_abs, tag = 'smem constant byte address 0x4 - core index']
  #allocation1 [shape = 'u32[144,128]{1,0:T(1,128)}', space=vmem, size = 0x12000, scoped, tag = 'internal scratch']
  %s0 = inlined_call_operand.vmem [shape: f32[2,16,16,128], index: 0, kind: input, shape index: {}]
  %s1 = inlined_call_operand.vmem [shape: f32[2,16,16,27], index: 1, kind: input, shape index: {}]
  %s2 = inlined_call_operand.vmem [shape: f32[27,256], index: 2, kind: input, shape index: {}]
  %s3 = inlined_call_operand.vmem [shape: f32[1,256], index: 3, kind: input, shape index: {}]
  %s4 = inlined_call_operand.vmem [shape: bf16[128,128], index: 4, kind: input, shape index: {}]
  %s5 = inlined_call_operand.vmem [shape: f32[1,128], index: 5, kind: input, shape index: {}]
  %s6 = inlined_call_operand.vmem [shape: f32[27,512], index: 6, kind: input, shape index: {}]
  %s7 = inlined_call_operand.vmem [shape: f32[1,512], index: 7, kind: input, shape index: {}]
  %s8 = inlined_call_operand.vmem [shape: bf16[256,128], index: 8, kind: input, shape index: {}]
  %s9 = inlined_call_operand.vmem [shape: f32[1,128], index: 9, kind: input, shape index: {}]
  %s10 = inlined_call_operand.vmem [shape: f32[2,16,16,128], index: 10, kind: output, shape index: {}]
  %s11 = sld [smem:[#allocation0]]
  $region73: #{resblk_spade_pallas.1} parent=0
    _
  %s13 = ssub.s32 1, %s11
  %s14 = scalar_select 0, %s13, %s11
  loop: start=0, step=1, limit=4
  $region2: #{resblk_spade_pallas.1} parent=0 // loop_pre_header
    _
  $region3: #{resblk_spade_pallas.1} parent=0 // loop_header
    %s16 = sphi 0, %s20
    %p17 = scmp.ge.s32.totalorder %s16, 4
    %s26 = sphi 0, %s28
    %s29 = sphi 0, %s26
    %s30 = sphi 0, %s29
    %s46 = sphi 0, %s30
    %s52 = sphi 0, %s54
    %s55 = sphi 0, %s52
    %s56 = sphi 0, %s55
    %s72 = sphi 0, %s56
    %s76 = sphi 0, %s76
    %s78 = sphi 0, %s76
    %s79 = sphi 0, %s78
    %s93 = sphi 0, %s79
    %s97 = sphi 0, %s97
    %s99 = sphi 0, %s97
    %s100 = sphi 0, %s99
    %s114 = sphi 0, %s100
    %s118 = sphi 0, %s118
    %s120 = sphi 0, %s118
    %s121 = sphi 0, %s120
    %s135 = sphi 0, %s121
    %s139 = sphi 0, %s139
    %s141 = sphi 0, %s139
    %s142 = sphi 0, %s141
    %s156 = sphi 0, %s142
    %s160 = sphi 0, %s160
    %s162 = sphi 0, %s160
    %s163 = sphi 0, %s162
    %s177 = sphi 0, %s163
    %s181 = sphi 0, %s181
    %s183 = sphi 0, %s181
    %s184 = sphi 0, %s183
    %s198 = sphi 0, %s184
    %s202 = sphi 0, %s202
    %s204 = sphi 0, %s202
    %s205 = sphi 0, %s204
    %s219 = sphi 0, %s205
    %s223 = sphi 0, %s223
    %s225 = sphi 0, %s223
    %s226 = sphi 0, %s225
    %s240 = sphi 0, %s226
    %s246 = sphi 0, %s248
    %s249 = sphi 0, %s246
    %s250 = sphi 0, %s249
    %s266 = sphi 0, %s250
  $region4: #{resblk_spade_pallas.1} parent=0 // loop_header_branch
    %19 = sbr.rel (%p17) target = $region8
  $region5: #{resblk_spade_pallas.1} parent=0 // loop_body
    %s21 = ssub.s32 %s16, 1
    %s22 = ssub.s32 %s16, 2
    %s23 = sadd.s32 %s16, 1
    %s24 = ssub.s32 %s16, %s23
    %p25 = scmp.eq.s32.totalorder %s24, 0
    %s27 = sadd.s32 %s26, 1
    %s28 = scalar_select %p25, %s26, %s27
    %p31 = pneg %p25
    %p32 = scmp.eq.s32.totalorder %s16, 1
    %p33 = por %p31, %p32
    %p34 = scmp.ne.s32.totalorder %s26, %s29
    %p35 = scmp.eq.s32.totalorder %s16, 0
    %p36 = por %p34, %p35
    %p37 = scmp.ne.s32.totalorder %s26, %s29
    %p38 = scmp.eq.s32.totalorder %s21, 1
    %p39 = por %p37, %p38
    %p40 = scmp.ne.s32.totalorder %s29, %s30
    %p41 = scmp.eq.s32.totalorder %s21, 0
    %p42 = por %p40, %p41
    %p43 = scmp.ne.s32.totalorder %s29, %s30
    %p44 = scmp.eq.s32.totalorder %s22, 1
    %p45 = por %p43, %p44
    %p47 = scmp.ne.s32.totalorder %s30, %s46
    %p48 = scmp.eq.s32.totalorder %s22, 0
    %p49 = por %p47, %p48
    %s50 = ssub.s32 %s16, %s23
    %p51 = scmp.eq.s32.totalorder %s50, 0
    %s53 = sadd.s32 %s52, 1
    %s54 = scalar_select %p51, %s52, %s53
    %p57 = pneg %p51
    %p58 = scmp.eq.s32.totalorder %s16, 1
    %p59 = por %p57, %p58
    %p60 = scmp.ne.s32.totalorder %s52, %s55
    %p61 = scmp.eq.s32.totalorder %s16, 0
    %p62 = por %p60, %p61
    %p63 = scmp.ne.s32.totalorder %s52, %s55
    %p64 = scmp.eq.s32.totalorder %s21, 1
    %p65 = por %p63, %p64
    %p66 = scmp.ne.s32.totalorder %s55, %s56
    %p67 = scmp.eq.s32.totalorder %s21, 0
    %p68 = por %p66, %p67
    %p69 = scmp.ne.s32.totalorder %s55, %s56
    %p70 = scmp.eq.s32.totalorder %s22, 1
    %p71 = por %p69, %p70
    %p73 = scmp.ne.s32.totalorder %s56, %s72
    %p74 = scmp.eq.s32.totalorder %s22, 0
    %p75 = por %p73, %p74
    %s77 = sadd.s32 %s76, 1
    %p80 = scmp.eq.s32.totalorder %s16, 1
    %p81 = scmp.ne.s32.totalorder %s76, %s78
    %p82 = scmp.eq.s32.totalorder %s16, 0
    %p83 = por %p81, %p82
    %p84 = scmp.ne.s32.totalorder %s76, %s78
    %p85 = scmp.eq.s32.totalorder %s21, 1
    %p86 = por %p84, %p85
    %p87 = scmp.ne.s32.totalorder %s78, %s79
    %p88 = scmp.eq.s32.totalorder %s21, 0
    %p89 = por %p87, %p88
    %p90 = scmp.ne.s32.totalorder %s78, %s79
    %p91 = scmp.eq.s32.totalorder %s22, 1
    %p92 = por %p90, %p91
    %p94 = scmp.ne.s32.totalorder %s79, %s93
    %p95 = scmp.eq.s32.totalorder %s22, 0
    %p96 = por %p94, %p95
    %s98 = sadd.s32 %s97, 1
    %p101 = scmp.eq.s32.totalorder %s16, 1
    %p102 = scmp.ne.s32.totalorder %s97, %s99
    %p103 = scmp.eq.s32.totalorder %s16, 0
    %p104 = por %p102, %p103
    %p105 = scmp.ne.s32.totalorder %s97, %s99
    %p106 = scmp.eq.s32.totalorder %s21, 1
    %p107 = por %p105, %p106
    %p108 = scmp.ne.s32.totalorder %s99, %s100
    %p109 = scmp.eq.s32.totalorder %s21, 0
    %p110 = por %p108, %p109
    %p111 = scmp.ne.s32.totalorder %s99, %s100
    %p112 = scmp.eq.s32.totalorder %s22, 1
    %p113 = por %p111, %p112
    %p115 = scmp.ne.s32.totalorder %s100, %s114
    %p116 = scmp.eq.s32.totalorder %s22, 0
    %p117 = por %p115, %p116
    %s119 = sadd.s32 %s118, 1
    %p122 = scmp.eq.s32.totalorder %s16, 1
    %p123 = scmp.ne.s32.totalorder %s118, %s120
    %p124 = scmp.eq.s32.totalorder %s16, 0
    %p125 = por %p123, %p124
    %p126 = scmp.ne.s32.totalorder %s118, %s120
    %p127 = scmp.eq.s32.totalorder %s21, 1
    %p128 = por %p126, %p127
    %p129 = scmp.ne.s32.totalorder %s120, %s121
    %p130 = scmp.eq.s32.totalorder %s21, 0
    %p131 = por %p129, %p130
    %p132 = scmp.ne.s32.totalorder %s120, %s121
    %p133 = scmp.eq.s32.totalorder %s22, 1
    %p134 = por %p132, %p133
    %p136 = scmp.ne.s32.totalorder %s121, %s135
    %p137 = scmp.eq.s32.totalorder %s22, 0
    %p138 = por %p136, %p137
    %s140 = sadd.s32 %s139, 1
    %p143 = scmp.eq.s32.totalorder %s16, 1
    %p144 = scmp.ne.s32.totalorder %s139, %s141
    %p145 = scmp.eq.s32.totalorder %s16, 0
    %p146 = por %p144, %p145
    %p147 = scmp.ne.s32.totalorder %s139, %s141
    %p148 = scmp.eq.s32.totalorder %s21, 1
    %p149 = por %p147, %p148
    %p150 = scmp.ne.s32.totalorder %s141, %s142
    %p151 = scmp.eq.s32.totalorder %s21, 0
    %p152 = por %p150, %p151
    %p153 = scmp.ne.s32.totalorder %s141, %s142
    %p154 = scmp.eq.s32.totalorder %s22, 1
    %p155 = por %p153, %p154
    %p157 = scmp.ne.s32.totalorder %s142, %s156
    %p158 = scmp.eq.s32.totalorder %s22, 0
    %p159 = por %p157, %p158
    %s161 = sadd.s32 %s160, 1
    %p164 = scmp.eq.s32.totalorder %s16, 1
    %p165 = scmp.ne.s32.totalorder %s160, %s162
    %p166 = scmp.eq.s32.totalorder %s16, 0
    %p167 = por %p165, %p166
    %p168 = scmp.ne.s32.totalorder %s160, %s162
    %p169 = scmp.eq.s32.totalorder %s21, 1
    %p170 = por %p168, %p169
    %p171 = scmp.ne.s32.totalorder %s162, %s163
    %p172 = scmp.eq.s32.totalorder %s21, 0
    %p173 = por %p171, %p172
    %p174 = scmp.ne.s32.totalorder %s162, %s163
    %p175 = scmp.eq.s32.totalorder %s22, 1
    %p176 = por %p174, %p175
    %p178 = scmp.ne.s32.totalorder %s163, %s177
    %p179 = scmp.eq.s32.totalorder %s22, 0
    %p180 = por %p178, %p179
    %s182 = sadd.s32 %s181, 1
    %p185 = scmp.eq.s32.totalorder %s16, 1
    %p186 = scmp.ne.s32.totalorder %s181, %s183
    %p187 = scmp.eq.s32.totalorder %s16, 0
    %p188 = por %p186, %p187
    %p189 = scmp.ne.s32.totalorder %s181, %s183
    %p190 = scmp.eq.s32.totalorder %s21, 1
    %p191 = por %p189, %p190
    %p192 = scmp.ne.s32.totalorder %s183, %s184
    %p193 = scmp.eq.s32.totalorder %s21, 0
    %p194 = por %p192, %p193
    %p195 = scmp.ne.s32.totalorder %s183, %s184
    %p196 = scmp.eq.s32.totalorder %s22, 1
    %p197 = por %p195, %p196
    %p199 = scmp.ne.s32.totalorder %s184, %s198
    %p200 = scmp.eq.s32.totalorder %s22, 0
    %p201 = por %p199, %p200
    %s203 = sadd.s32 %s202, 1
    %p206 = scmp.eq.s32.totalorder %s16, 1
    %p207 = scmp.ne.s32.totalorder %s202, %s204
    %p208 = scmp.eq.s32.totalorder %s16, 0
    %p209 = por %p207, %p208
    %p210 = scmp.ne.s32.totalorder %s202, %s204
    %p211 = scmp.eq.s32.totalorder %s21, 1
    %p212 = por %p210, %p211
    %p213 = scmp.ne.s32.totalorder %s204, %s205
    %p214 = scmp.eq.s32.totalorder %s21, 0
    %p215 = por %p213, %p214
    %p216 = scmp.ne.s32.totalorder %s204, %s205
    %p217 = scmp.eq.s32.totalorder %s22, 1
    %p218 = por %p216, %p217
    %p220 = scmp.ne.s32.totalorder %s205, %s219
    %p221 = scmp.eq.s32.totalorder %s22, 0
    %p222 = por %p220, %p221
    %s224 = sadd.s32 %s223, 1
    %p227 = scmp.eq.s32.totalorder %s16, 1
    %p228 = scmp.ne.s32.totalorder %s223, %s225
    %p229 = scmp.eq.s32.totalorder %s16, 0
    %p230 = por %p228, %p229
    %p231 = scmp.ne.s32.totalorder %s223, %s225
    %p232 = scmp.eq.s32.totalorder %s21, 1
    %p233 = por %p231, %p232
    %p234 = scmp.ne.s32.totalorder %s225, %s226
    %p235 = scmp.eq.s32.totalorder %s21, 0
    %p236 = por %p234, %p235
    %p237 = scmp.ne.s32.totalorder %s225, %s226
    %p238 = scmp.eq.s32.totalorder %s22, 1
    %p239 = por %p237, %p238
    %p241 = scmp.ne.s32.totalorder %s226, %s240
    %p242 = scmp.eq.s32.totalorder %s22, 0
    %p243 = por %p241, %p242
    %s244 = ssub.s32 %s16, %s23
    %p245 = scmp.eq.s32.totalorder %s244, 0
    %s247 = sadd.s32 %s246, 1
    %s248 = scalar_select %p245, %s246, %s247
    %p251 = pneg %p245
    %p252 = scmp.eq.s32.totalorder %s16, 1
    %p253 = por %p251, %p252
    %p254 = scmp.ne.s32.totalorder %s246, %s249
    %p255 = scmp.eq.s32.totalorder %s16, 0
    %p256 = por %p254, %p255
    %p257 = scmp.ne.s32.totalorder %s246, %s249
    %p258 = scmp.eq.s32.totalorder %s21, 1
    %p259 = por %p257, %p258
    %p260 = scmp.ne.s32.totalorder %s249, %s250
    %p261 = scmp.eq.s32.totalorder %s21, 0
    %p262 = por %p260, %p261
    %p263 = scmp.ne.s32.totalorder %s249, %s250
    %p264 = scmp.eq.s32.totalorder %s22, 1
    %p265 = por %p263, %p264
    %p267 = scmp.ne.s32.totalorder %s250, %s266
    %p268 = scmp.eq.s32.totalorder %s22, 0
    %p269 = por %p267, %p268
    %p270 = scmp.le.s32.totalorder 1, %s16
    %p271 = scmp.lt.s32.totalorder %s16, 3
    %p272 = pnand %p270, %p271
    %p273 = pneg %p272
    // Predicated region
    $region9: #{resblk_spade_pallas.1} parent=5 // pred_check
      _
    $region10: #{resblk_spade_pallas.1} parent=5 // pred_check_branch
      %275 = sbr.rel (%p272) target = $region12
    $region11: #{resblk_spade_pallas.1} parent=5 // pred_region
      %s276 = ssub.s32 %s16, 1
      // Predicated region
      $region13: #{resblk_spade_pallas.1} parent=11 // pred_check
        %p277 = pneg %p89
      $region14: #{resblk_spade_pallas.1} parent=11 // pred_check_branch
        %279 = sbr.rel (%p277) target = $region16
      $region15: #{resblk_spade_pallas.1} parent=11 // pred_region
        _
      $region16: #{resblk_spade_pallas.1} parent=11 // pred_fallthru
        _
      // Predicated region
      $region17: #{resblk_spade_pallas.1} parent=11 // pred_check
        %p280 = pneg %p110
      $region18: #{resblk_spade_pallas.1} parent=11 // pred_check_branch
        %282 = sbr.rel (%p280) target = $region20
      $region19: #{resblk_spade_pallas.1} parent=11 // pred_region
        _
      $region20: #{resblk_spade_pallas.1} parent=11 // pred_fallthru
        _
      // Predicated region
      $region21: #{resblk_spade_pallas.1} parent=11 // pred_check
        %p283 = pneg %p131
      $region22: #{resblk_spade_pallas.1} parent=11 // pred_check_branch
        %285 = sbr.rel (%p283) target = $region24
      $region23: #{resblk_spade_pallas.1} parent=11 // pred_region
        _
      $region24: #{resblk_spade_pallas.1} parent=11 // pred_fallthru
        _
      // Predicated region
      $region25: #{resblk_spade_pallas.1} parent=11 // pred_check
        %p286 = pneg %p152
      $region26: #{resblk_spade_pallas.1} parent=11 // pred_check_branch
        %288 = sbr.rel (%p286) target = $region28
      $region27: #{resblk_spade_pallas.1} parent=11 // pred_region
        _
      $region28: #{resblk_spade_pallas.1} parent=11 // pred_fallthru
        _
      // Predicated region
      $region29: #{resblk_spade_pallas.1} parent=11 // pred_check
        %p289 = pneg %p173
      $region30: #{resblk_spade_pallas.1} parent=11 // pred_check_branch
        %291 = sbr.rel (%p289) target = $region32
      $region31: #{resblk_spade_pallas.1} parent=11 // pred_region
        _
      $region32: #{resblk_spade_pallas.1} parent=11 // pred_fallthru
        _
      // Predicated region
      $region33: #{resblk_spade_pallas.1} parent=11 // pred_check
        %p292 = pneg %p194
      $region34: #{resblk_spade_pallas.1} parent=11 // pred_check_branch
        %294 = sbr.rel (%p292) target = $region36
      $region35: #{resblk_spade_pallas.1} parent=11 // pred_region
        _
      $region36: #{resblk_spade_pallas.1} parent=11 // pred_fallthru
        _
      // Predicated region
      $region37: #{resblk_spade_pallas.1} parent=11 // pred_check
        %p295 = pneg %p215
      $region38: #{resblk_spade_pallas.1} parent=11 // pred_check_branch
        %297 = sbr.rel (%p295) target = $region40
      $region39: #{resblk_spade_pallas.1} parent=11 // pred_region
        _
      $region40: #{resblk_spade_pallas.1} parent=11 // pred_fallthru
        _
      // Predicated region
      $region41: #{resblk_spade_pallas.1} parent=11 // pred_check
        %p298 = pneg %p236
      $region42: #{resblk_spade_pallas.1} parent=11 // pred_check_branch
        %300 = sbr.rel (%p298) target = $region44
      $region43: #{resblk_spade_pallas.1} parent=11 // pred_region
        _
      $region44: #{resblk_spade_pallas.1} parent=11 // pred_fallthru
        _
    $region12: #{resblk_spade_pallas.1} parent=5 // pred_fallthru
      _
    %p301 = scmp.lt.s32.totalorder %s16, 2
    // Predicated region
    $region45: #{resblk_spade_pallas.1} parent=5 // pred_check
      %p302 = pneg %p301
    $region46: #{resblk_spade_pallas.1} parent=5 // pred_check_branch
      %304 = sbr.rel (%p302) target = $region48
    $region47: #{resblk_spade_pallas.1} parent=5 // pred_region
      // Predicated region
      $region49: #{resblk_spade_pallas.1} parent=47 // pred_check
        %p305 = pneg %p36
      $region50: #{resblk_spade_pallas.1} parent=47 // pred_check_branch
        %307 = sbr.rel (%p305) target = $region52
      $region51: #{resblk_spade_pallas.1} parent=47 // pred_region
        %p308 = scmp.lt.s32.totalorder %s16, 1
        %s309 = scalar_select %p308, %s16, 1
        %s310 = smul.addr %s309, 32
        %s311 = smul.addr %s310, 8
        %s312 = scalar_lea.vmem %s0, %s311
      $region52: #{resblk_spade_pallas.1} parent=47 // pred_fallthru
        _
      // Predicated region
      $region53: #{resblk_spade_pallas.1} parent=47 // pred_check
        %p313 = pneg %p62
      $region54: #{resblk_spade_pallas.1} parent=47 // pred_check_branch
        %315 = sbr.rel (%p313) target = $region56
      $region55: #{resblk_spade_pallas.1} parent=47 // pred_region
        %p316 = scmp.lt.s32.totalorder %s16, 1
        %s317 = scalar_select %p316, %s16, 1
        %s318 = smul.addr %s317, 32
        %s319 = smul.addr %s318, 8
        %s320 = scalar_lea.vmem %s1, %s319
      $region56: #{resblk_spade_pallas.1} parent=47 // pred_fallthru
        _
    $region48: #{resblk_spade_pallas.1} parent=5 // pred_fallthru
      _
    %p321 = scmp.le.s32.totalorder 1, %s16
    %p322 = scmp.lt.s32.totalorder %s16, 3
    %p323 = pnand %p321, %p322
    %p324 = pneg %p323
    // Predicated region
    $region57: #{resblk_spade_pallas.1} parent=5 // pred_check
      _
    $region58: #{resblk_spade_pallas.1} parent=5 // pred_check_branch
      %326 = sbr.rel (%p323) target = $region60
    $region59: #{resblk_spade_pallas.1} parent=5 // pred_region
      %s327 = ssub.s32 %s16, 1
      %p328 = scmp.lt.s32.totalorder %s21, 1
      %s329 = scalar_select %p328, %s21, 1
      %s330 = smul.addr %s329, 32
      %s331 = smul.addr %s330, 8
      %s332 = scalar_lea.vmem %s0, %s331
      %p333 = pneg %p42
      %p334 = pneg %p39
      %p335 = scmp.lt.s32.totalorder %s21, 1
      %s336 = scalar_select %p335, %s21, 1
      %s337 = smul.addr %s336, 32
      %s338 = smul.addr %s337, 8
      %s339 = scalar_lea.vmem %s1, %s338
      %p340 = pneg %p68
      %p341 = pneg %p65
      %p342 = pneg %p89
      %p343 = pneg %p86
      %p344 = pneg %p110
      %p345 = pneg %p107
      %p346 = pneg %p131
      %p347 = pneg %p128
      %p348 = pneg %p152
      %p349 = pneg %p149
      %p350 = pneg %p173
      %p351 = pneg %p170
      %p352 = pneg %p194
      %p353 = pneg %p191
      %p354 = pneg %p215
      %p355 = pneg %p212
      %p356 = pneg %p236
      %p357 = pneg %p233
      %p358 = pneg %p262
      %p359 = pneg %p259
      %p360 = scmp.lt.s32.totalorder %s21, 1
      %s361 = scalar_select %p360, %s21, 1
      %s362 = smul.addr %s361, 32
      %s363 = smul.addr %s362, 8
      %s364 = scalar_lea.vmem %s10, %s363
      %p365 = scmp.lt.s32.totalorder %s21, 1
      %s366 = scalar_select %p365, %s21, 1
      %s367 = smul.addr %s366, 32
      %s368 = smul.addr %s367, 8
      %s369 = scalar_lea.vmem %s0, %s368
      %p370 = scmp.lt.s32.totalorder %s21, 1
      %s371 = scalar_select %p370, %s21, 1
      %s372 = smul.addr %s371, 32
      %s373 = smul.addr %s372, 8
      %s374 = scalar_lea.vmem %s1, %s373
      %p375 = scmp.lt.s32.totalorder %s21, 1
      %s376 = scalar_select %p375, %s21, 1
      %s377 = smul.addr %s376, 32
      %s378 = smul.addr %s377, 8
      %s379 = scalar_lea.vmem %s10, %s378
      %v381 = vld [vmem:[%s369] sm:$0xff]
      %v382 = vld [vmem:[%s369 + $0x8] sm:$0xff]
      %v383 = vld [vmem:[%s369 + $0x10] sm:$0xff]
      %v384 = vld [vmem:[%s369 + $0x18] sm:$0xff]
      %v385 = vld [vmem:[%s369 + $0x20] sm:$0xff]
      %v386 = vld [vmem:[%s369 + $0x28] sm:$0xff]
      %v387 = vld [vmem:[%s369 + $0x30] sm:$0xff]
      %v388 = vld [vmem:[%s369 + $0x38] sm:$0xff]
      %v389 = vld [vmem:[%s369 + $0x40] sm:$0xff]
      %v390 = vld [vmem:[%s369 + $0x48] sm:$0xff]
      %v391 = vld [vmem:[%s369 + $0x50] sm:$0xff]
      %v392 = vld [vmem:[%s369 + $0x58] sm:$0xff]
      %v393 = vld [vmem:[%s369 + $0x60] sm:$0xff]
      %v394 = vld [vmem:[%s369 + $0x68] sm:$0xff]
      %v395 = vld [vmem:[%s369 + $0x70] sm:$0xff]
      %v396 = vld [vmem:[%s369 + $0x78] sm:$0xff]
      %v397 = vld [vmem:[%s369 + $0x80] sm:$0xff]
      %v398 = vld [vmem:[%s369 + $0x88] sm:$0xff]
      %v399 = vld [vmem:[%s369 + $0x90] sm:$0xff]
      %v400 = vld [vmem:[%s369 + $0x98] sm:$0xff]
      %v401 = vld [vmem:[%s369 + $0xa0] sm:$0xff]
      %v402 = vld [vmem:[%s369 + $0xa8] sm:$0xff]
      %v403 = vld [vmem:[%s369 + $0xb0] sm:$0xff]
      %v404 = vld [vmem:[%s369 + $0xb8] sm:$0xff]
      %v405 = vld [vmem:[%s369 + $0xc0] sm:$0xff]
      %v406 = vld [vmem:[%s369 + $0xc8] sm:$0xff]
      %v407 = vld [vmem:[%s369 + $0xd0] sm:$0xff]
      %v408 = vld [vmem:[%s369 + $0xd8] sm:$0xff]
      %v409 = vld [vmem:[%s369 + $0xe0] sm:$0xff]
      %v410 = vld [vmem:[%s369 + $0xe8] sm:$0xff]
      %v411 = vld [vmem:[%s369 + $0xf0] sm:$0xff]
      %v412 = vld [vmem:[%s369 + $0xf8] sm:$0xff]
      %v413 = vadd.f32 %v381, %v382
      %v414 = vadd.f32 %v413, %v383
      %v415 = vadd.f32 %v414, %v384
      %v416 = vadd.f32 %v415, %v385
      %v417 = vadd.f32 %v416, %v386
      %v418 = vadd.f32 %v417, %v387
      %v419 = vadd.f32 %v418, %v388
      %v420 = vadd.f32 %v419, %v389
      %v421 = vadd.f32 %v420, %v390
      %v422 = vadd.f32 %v421, %v391
      %v423 = vadd.f32 %v422, %v392
      %v424 = vadd.f32 %v423, %v393
      %v425 = vadd.f32 %v424, %v394
      %v426 = vadd.f32 %v425, %v395
      %v427 = vadd.f32 %v426, %v396
      %v428 = vadd.f32 %v427, %v397
      %v429 = vadd.f32 %v428, %v398
      %v430 = vadd.f32 %v429, %v399
      %v431 = vadd.f32 %v430, %v400
      %v432 = vadd.f32 %v431, %v401
      %v433 = vadd.f32 %v432, %v402
      %v434 = vadd.f32 %v433, %v403
      %v435 = vadd.f32 %v434, %v404
      %v436 = vadd.f32 %v435, %v405
      %v437 = vadd.f32 %v436, %v406
      %v438 = vadd.f32 %v437, %v407
      %v439 = vadd.f32 %v438, %v408
      %v440 = vadd.f32 %v439, %v409
      %v441 = vadd.f32 %v440, %v410
      %v442 = vadd.f32 %v441, %v411
      %v443 = vadd.f32 %v442, %v412
      %v444 = vrot.slane %v443, 4
      %v445 = vadd.f32 %v443, %v444
      %v446 = vrot.slane %v445, 2
      %v447 = vadd.f32 %v445, %v446
      %v448 = vrot.slane %v447, 1
      %v449 = vadd.f32 %v447, %v448
      %v450 = vmul.f32 %v449, 0.00390625
      %v451 = vsub.f32 %v381, %v450
      %v452 = vsub.f32 %v382, %v450
      %v453 = vsub.f32 %v383, %v450
      %v454 = vsub.f32 %v384, %v450
      %v455 = vsub.f32 %v385, %v450
      %v456 = vsub.f32 %v386, %v450
      %v457 = vsub.f32 %v387, %v450
      %v458 = vsub.f32 %v388, %v450
      %v459 = vsub.f32 %v389, %v450
      %v460 = vsub.f32 %v390, %v450
      %v461 = vsub.f32 %v391, %v450
      %v462 = vsub.f32 %v392, %v450
      %v463 = vsub.f32 %v393, %v450
      %v464 = vsub.f32 %v394, %v450
      %v465 = vsub.f32 %v395, %v450
      %v466 = vsub.f32 %v396, %v450
      %v467 = vsub.f32 %v397, %v450
      %v468 = vsub.f32 %v398, %v450
      %v469 = vsub.f32 %v399, %v450
      %v470 = vsub.f32 %v400, %v450
      %v471 = vsub.f32 %v401, %v450
      %v472 = vsub.f32 %v402, %v450
      %v473 = vsub.f32 %v403, %v450
      %v474 = vsub.f32 %v404, %v450
      %v475 = vsub.f32 %v405, %v450
      %v476 = vsub.f32 %v406, %v450
      %v477 = vsub.f32 %v407, %v450
      %v478 = vsub.f32 %v408, %v450
      %v479 = vsub.f32 %v409, %v450
      %v480 = vsub.f32 %v410, %v450
      %v481 = vsub.f32 %v411, %v450
      %v482 = vsub.f32 %v412, %v450
      %v483 = vmul.f32 %v451, %v451
      %v484 = vmul.f32 %v452, %v452
      %v485 = vmul.f32 %v453, %v453
      %v486 = vmul.f32 %v454, %v454
      %v487 = vmul.f32 %v455, %v455
      %v488 = vmul.f32 %v456, %v456
      %v489 = vmul.f32 %v457, %v457
      %v490 = vmul.f32 %v458, %v458
      %v491 = vmul.f32 %v459, %v459
      %v492 = vmul.f32 %v460, %v460
      %v493 = vmul.f32 %v461, %v461
      %v494 = vmul.f32 %v462, %v462
      %v495 = vmul.f32 %v463, %v463
      %v496 = vmul.f32 %v464, %v464
      %v497 = vmul.f32 %v465, %v465
      %v498 = vmul.f32 %v466, %v466
      %v499 = vmul.f32 %v467, %v467
      %v500 = vmul.f32 %v468, %v468
      %v501 = vmul.f32 %v469, %v469
      %v502 = vmul.f32 %v470, %v470
      %v503 = vmul.f32 %v471, %v471
      %v504 = vmul.f32 %v472, %v472
      %v505 = vmul.f32 %v473, %v473
      %v506 = vmul.f32 %v474, %v474
      %v507 = vmul.f32 %v475, %v475
      %v508 = vmul.f32 %v476, %v476
      %v509 = vmul.f32 %v477, %v477
      %v510 = vmul.f32 %v478, %v478
      %v511 = vmul.f32 %v479, %v479
      %v512 = vmul.f32 %v480, %v480
      %v513 = vmul.f32 %v481, %v481
      %v514 = vmul.f32 %v482, %v482
      %v515 = vadd.f32 %v483, %v484
      %v516 = vadd.f32 %v515, %v485
      %v517 = vadd.f32 %v516, %v486
      %v518 = vadd.f32 %v517, %v487
      %v519 = vadd.f32 %v518, %v488
      %v520 = vadd.f32 %v519, %v489
      %v521 = vadd.f32 %v520, %v490
      %v522 = vadd.f32 %v521, %v491
      %v523 = vadd.f32 %v522, %v492
      %v524 = vadd.f32 %v523, %v493
      %v525 = vadd.f32 %v524, %v494
      %v526 = vadd.f32 %v525, %v495
      %v527 = vadd.f32 %v526, %v496
      %v528 = vadd.f32 %v527, %v497
      %v529 = vadd.f32 %v528, %v498
      %v530 = vadd.f32 %v529, %v499
      %v531 = vadd.f32 %v530, %v500
      %v532 = vadd.f32 %v531, %v501
      %v533 = vadd.f32 %v532, %v502
      %v534 = vadd.f32 %v533, %v503
      %v535 = vadd.f32 %v534, %v504
      %v536 = vadd.f32 %v535, %v505
      %v537 = vadd.f32 %v536, %v506
      %v538 = vadd.f32 %v537, %v507
      %v539 = vadd.f32 %v538, %v508
      %v540 = vadd.f32 %v539, %v509
      %v541 = vadd.f32 %v540, %v510
      %v542 = vadd.f32 %v541, %v511
      %v543 = vadd.f32 %v542, %v512
      %v544 = vadd.f32 %v543, %v513
      %v545 = vadd.f32 %v544, %v514
      %v546 = vrot.slane %v545, 4
      %v547 = vadd.f32 %v545, %v546
      %v548 = vrot.slane %v547, 2
      %v549 = vadd.f32 %v547, %v548
      %v550 = vrot.slane %v549, 1
      %v551 = vadd.f32 %v549, %v550
      %v552 = vmul.f32 %v551, 0.00390625
      %v553 = vadd.f32 %v552, 1e-05
      %v554 = vrsqrt.pop %v553
      %v555 = vmul.f32 %v451, %v554
      %v556 = vmul.f32 %v452, %v554
      %v557 = vmul.f32 %v453, %v554
      %v558 = vmul.f32 %v454, %v554
      %v559 = vmul.f32 %v455, %v554
      %v560 = vmul.f32 %v456, %v554
      %v561 = vmul.f32 %v457, %v554
      %v562 = vmul.f32 %v458, %v554
      %v563 = vmul.f32 %v459, %v554
      %v564 = vmul.f32 %v460, %v554
      %v565 = vmul.f32 %v461, %v554
      %v566 = vmul.f32 %v462, %v554
      %v567 = vmul.f32 %v463, %v554
      %v568 = vmul.f32 %v464, %v554
      %v569 = vmul.f32 %v465, %v554
      %v570 = vmul.f32 %v466, %v554
      %v571 = vmul.f32 %v467, %v554
      %v572 = vmul.f32 %v468, %v554
      %v573 = vmul.f32 %v469, %v554
      %v574 = vmul.f32 %v470, %v554
      %v575 = vmul.f32 %v471, %v554
      %v576 = vmul.f32 %v472, %v554
      %v577 = vmul.f32 %v473, %v554
      %v578 = vmul.f32 %v474, %v554
      %v579 = vmul.f32 %v475, %v554
      %v580 = vmul.f32 %v476, %v554
      %v581 = vmul.f32 %v477, %v554
      %v582 = vmul.f32 %v478, %v554
      %v583 = vmul.f32 %v479, %v554
      %v584 = vmul.f32 %v480, %v554
      %v585 = vmul.f32 %v481, %v554
      %v586 = vmul.f32 %v482, %v554
      %v587 = vld [vmem:[%s374] sm:$0xff]
      %v588 = vld [vmem:[%s374 + $0x8] sm:$0xff]
      %v589 = vld [vmem:[%s374 + $0x10] sm:$0xff]
      %v590 = vld [vmem:[%s374 + $0x18] sm:$0xff]
      %v591 = vld [vmem:[%s374 + $0x20] sm:$0xff]
      %v592 = vld [vmem:[%s374 + $0x28] sm:$0xff]
      %v593 = vld [vmem:[%s374 + $0x30] sm:$0xff]
      %v594 = vld [vmem:[%s374 + $0x38] sm:$0xff]
      %v595 = vld [vmem:[%s374 + $0x40] sm:$0xff]
      %v596 = vld [vmem:[%s374 + $0x48] sm:$0xff]
      %v597 = vld [vmem:[%s374 + $0x50] sm:$0xff]
      %v598 = vld [vmem:[%s374 + $0x58] sm:$0xff]
      %v599 = vld [vmem:[%s374 + $0x60] sm:$0xff]
      %v600 = vld [vmem:[%s374 + $0x68] sm:$0xff]
      %v601 = vld [vmem:[%s374 + $0x70] sm:$0xff]
      %v602 = vld [vmem:[%s374 + $0x78] sm:$0xff]
      %v603 = vld [vmem:[%s374 + $0x80] sm:$0xff]
      %v604 = vld [vmem:[%s374 + $0x88] sm:$0xff]
      %v605 = vld [vmem:[%s374 + $0x90] sm:$0xff]
      %v606 = vld [vmem:[%s374 + $0x98] sm:$0xff]
      %v607 = vld [vmem:[%s374 + $0xa0] sm:$0xff]
      %v608 = vld [vmem:[%s374 + $0xa8] sm:$0xff]
      %v609 = vld [vmem:[%s374 + $0xb0] sm:$0xff]
      %v610 = vld [vmem:[%s374 + $0xb8] sm:$0xff]
      %v611 = vld [vmem:[%s374 + $0xc0] sm:$0xff]
      %v612 = vld [vmem:[%s374 + $0xc8] sm:$0xff]
      %v613 = vld [vmem:[%s374 + $0xd0] sm:$0xff]
      %v614 = vld [vmem:[%s374 + $0xd8] sm:$0xff]
      %v615 = vld [vmem:[%s374 + $0xe0] sm:$0xff]
      %v616 = vld [vmem:[%s374 + $0xe8] sm:$0xff]
      %v617 = vld [vmem:[%s374 + $0xf0] sm:$0xff]
      %v618 = vld [vmem:[%s374 + $0xf8] sm:$0xff]
      %v619 = vld [vmem:[%s2] sm:$0xff]
      %v620 = vld [vmem:[%s2 + $0x8] sm:$0xff]
      %v621 = vld [vmem:[%s2 + $0x10] sm:$0xff]
      %v622 = vld [vmem:[%s2 + $0x18] sm:$0xff]
      %v623 = vld [vmem:[%s2 + $0x20] sm:$0xff]
      %v624 = vld [vmem:[%s2 + $0x28] sm:$0xff]
      %v625 = vld [vmem:[%s2 + $0x30] sm:$0x7]
      %v626 = vld [vmem:[%s2 + $0x38] sm:$0x7]
      %v627 = vld [vmem:[%s3] sm:$0x3]
      %v629 = vlaneseq
      %v630 = vshrl.u32 %v629, 7
      %v631 = vsub.s32 0, %v630
      %v632 = vrot.slane %v627, %v631
      %v633 = vlaneseq
      %v634 = vshrl.u32 %v633, 7
      %v635 = vsub.s32 1, %v634
      %v636 = vrot.slane %v627, %v635
      %vm639 = vcmask 220160
      %v641 = vsel %vm639, %v587, 0
      %v644 = vsel %vm639, %v588, 0
      %v647 = vsel %vm639, %v589, 0
      %v650 = vsel %vm639, %v590, 0
      %v653 = vsel %vm639, %v591, 0
      %v656 = vsel %vm639, %v592, 0
      %v659 = vsel %vm639, %v593, 0
      %v662 = vsel %vm639, %v594, 0
      %v665 = vsel %vm639, %v595, 0
      %v668 = vsel %vm639, %v596, 0
      %v671 = vsel %vm639, %v597, 0
      %v674 = vsel %vm639, %v598, 0
      %v677 = vsel %vm639, %v599, 0
      %v680 = vsel %vm639, %v600, 0
      %v683 = vsel %vm639, %v601, 0
      %v686 = vsel %vm639, %v602, 0
      %v689 = vsel %vm639, %v603, 0
      %v692 = vsel %vm639, %v604, 0
      %v695 = vsel %vm639, %v605, 0
      %v698 = vsel %vm639, %v606, 0
      %v701 = vsel %vm639, %v607, 0
      %v704 = vsel %vm639, %v608, 0
      %v707 = vsel %vm639, %v609, 0
      %v710 = vsel %vm639, %v610, 0
      %v713 = vsel %vm639, %v611, 0
      %v716 = vsel %vm639, %v612, 0
      %v719 = vsel %vm639, %v613, 0
      %v722 = vsel %vm639, %v614, 0
      %v725 = vsel %vm639, %v615, 0
      %v728 = vsel %vm639, %v616, 0
      %v731 = vsel %vm639, %v617, 0
      %v734 = vsel %vm639, %v618, 0
      %vm736 = vcmask 1042432
      %v738 = vsel %vm736, %v625, 0
      %v741 = vsel %vm736, %v626, 0
      %743 = vmatprep.subr.mxu0 %v620
      %744 = vmatpush1.msra.mxu0 %v619
      %745 = vmatprep.subr.mxu0 %v622
      %746 = vmatpush1.msra.mxu0 %v621
      %747 = vmatprep.subr.mxu0 %v624
      %748 = vmatpush1.msra.mxu0 %v623
      %749 = vmatprep.subr.mxu0 %v741
      %750 = vmatpush1.msra.mxu0 %v738
      %751 = vmatprep.subr.mxu0 0.0
      %752 = vmatpush1.msra.mxu0 0.0
      %753 = vmatprep.subr.mxu0 0.0
      %754 = vmatpush1.msra.mxu0 0.0
      %755 = vmatprep.subr.mxu0 0.0
      %756 = vmatpush1.msra.mxu0 0.0
      %757 = vmatprep.subr.mxu0 0.0
      %758 = vmatpush1.msra.mxu0 0.0
      %759 = vmatprep.subr.mxu0 0.0
      %760 = vmatpush1.msra.mxu0 0.0
      %761 = vmatprep.subr.mxu0 0.0
      %762 = vmatpush1.msra.mxu0 0.0
      %763 = vmatprep.subr.mxu0 0.0
      %764 = vmatpush1.msra.mxu0 0.0
      %765 = vmatprep.subr.mxu0 0.0
      %766 = vmatpush1.msra.mxu0 0.0
      %767 = vmatprep.subr.mxu0 0.0
      %768 = vmatpush1.msra.mxu0 0.0
      %769 = vmatprep.subr.mxu0 0.0
      %770 = vmatpush1.msra.mxu0 0.0
      %771 = vmatprep.subr.mxu0 0.0
      %772 = vmatpush1.msra.mxu0 0.0
      %773 = vmatprep.subr.mxu0 0.0
      %774 = vmatpush1.msra.mxu0 0.0
      %775 = vmatprep.subr.mxu0 0.0
      %776 = vmatpush1.msra.mxu0 0.0
      %777 = vmatprep.subr.mxu0 0.0
      %778 = vmatpush1.msra.mxu0 0.0
      %779 = vmatprep.subr.mxu0 0.0
      %780 = vmatpush1.msra.mxu0 0.0
      %781 = vmatprep.subr.mxu0 0.0
      %782 = vmatpush1.msra.mxu0 0.0
      %783 = vmatprep.subr.mxu0 0.0
      %784 = vmatpush1.msra.mxu0 0.0
      %785 = vmatprep.subr.mxu0 0.0
      %786 = vmatpush1.msra.mxu0 0.0
      %787 = vmatprep.subr.mxu0 0.0
      %788 = vmatpush1.msra.mxu0 0.0
      %789 = vmatprep.subr.mxu0 0.0
      %790 = vmatpush1.msra.mxu0 0.0
      %791 = vmatprep.subr.mxu0 0.0
      %792 = vmatpush1.msra.mxu0 0.0
      %793 = vmatprep.subr.mxu0 0.0
      %794 = vmatpush1.msra.mxu0 0.0
      %795 = vmatprep.subr.mxu0 0.0
      %796 = vmatpush1.msra.mxu0 0.0
      %797 = vmatprep.subr.mxu0 0.0
      %798 = vmatpush1.msra.mxu0 0.0
      %799 = vmatprep.subr.mxu0 0.0
      %800 = vmatpush1.msra.mxu0 0.0
      %801 = vmatprep.subr.mxu0 0.0
      %802 = vmatpush1.msra.mxu0 0.0
      %803 = vmatprep.subr.mxu0 0.0
      %804 = vmatpush1.msra.mxu0 0.0
      %805 = vmatprep.subr.mxu0 0.0
      %806 = vmatpush1.msra.mxu0 0.0
      %807 = vmatprep.mubr.f32.mxu0 0.0
      %808 = vmatmul.mubr.f32.gmra.mrb[0].mxu0 %v641
      %v809 = vpop.f32.mrb[0].mxu0
      %v810 = vadd.f32 %v632, %v809
      %v811 = vpop.f32.mrb[0].mxu0
      %v812 = vadd.f32 %v636, %v811
      %813 = vmatprep.mubr.f32.mxu0 0.0
      %814 = vmatmul.mubr.f32.gmra.mrb[0].mxu0 %v644
      %v815 = vpop.f32.mrb[0].mxu0
      %v816 = vadd.f32 %v632, %v815
      %v817 = vpop.f32.mrb[0].mxu0
      %v818 = vadd.f32 %v636, %v817
      %819 = vmatprep.mubr.f32.mxu0 0.0
      %820 = vmatmul.mubr.f32.gmra.mrb[0].mxu0 %v647
      %v821 = vpop.f32.mrb[0].mxu0
      %v822 = vadd.f32 %v632, %v821
      %v823 = vpop.f32.mrb[0].mxu0
      %v824 = vadd.f32 %v636, %v823
      %825 = vmatprep.mubr.f32.mxu0 0.0
      %826 = vmatmul.mubr.f32.gmra.mrb[0].mxu0 %v650
      %v827 = vpop.f32.mrb[0].mxu0
      %v828 = vadd.f32 %v632, %v827
      %v829 = vpop.f32.mrb[0].mxu0
      %v830 = vadd.f32 %v636, %v829
      %831 = vmatprep.mubr.f32.mxu0 0.0
      %832 = vmatmul.mubr.f32.gmra.mrb[0].mxu0 %v653
      %v833 = vpop.f32.mrb[0].mxu0
      %v834 = vadd.f32 %v632, %v833
      %v835 = vpop.f32.mrb[0].mxu0
      %v836 = vadd.f32 %v636, %v835
      %837 = vmatprep.mubr.f32.mxu0 0.0
      %838 = vmatmul.mubr.f32.gmra.mrb[0].mxu0 %v656
      %v839 = vpop.f32.mrb[0].mxu0
      %v840 = vadd.f32 %v632, %v839
      %v841 = vpop.f32.mrb[0].mxu0
      %v842 = vadd.f32 %v636, %v841
      %843 = vmatprep.mubr.f32.mxu0 0.0
      %844 = vmatmul.mubr.f32.gmra.mrb[0].mxu0 %v659
      %v845 = vpop.f32.mrb[0].mxu0
      %v846 = vadd.f32 %v632, %v845
      %v847 = vpop.f32.mrb[0].mxu0
      %v848 = vadd.f32 %v636, %v847
      %849 = vmatprep.mubr.f32.mxu0 0.0
      %850 = vmatmul.mubr.f32.gmra.mrb[0].mxu0 %v662
      %v851 = vpop.f32.mrb[0].mxu0
      %v852 = vadd.f32 %v632, %v851
      %v853 = vpop.f32.mrb[0].mxu0
      %v854 = vadd.f32 %v636, %v853
      %855 = vmatprep.mubr.f32.mxu0 0.0
      %856 = vmatmul.mubr.f32.gmra.mrb[0].mxu0 %v665
      %v857 = vpop.f32.mrb[0].mxu0
      %v858 = vadd.f32 %v632, %v857
      %v859 = vpop.f32.mrb[0].mxu0
      %v860 = vadd.f32 %v636, %v859
      %861 = vmatprep.mubr.f32.mxu0 0.0
      %862 = vmatmul.mubr.f32.gmra.mrb[0].mxu0 %v668
      %v863 = vpop.f32.mrb[0].mxu0
      %v864 = vadd.f32 %v632, %v863
      %v865 = vpop.f32.mrb[0].mxu0
      %v866 = vadd.f32 %v636, %v865
      %867 = vmatprep.mubr.f32.mxu0 0.0
      %868 = vmatmul.mubr.f32.gmra.mrb[0].mxu0 %v671
      %v869 = vpop.f32.mrb[0].mxu0
      %v870 = vadd.f32 %v632, %v869
      %v871 = vpop.f32.mrb[0].mxu0
      %v872 = vadd.f32 %v636, %v871
      %873 = vmatprep.mubr.f32.mxu0 0.0
      %874 = vmatmul.mubr.f32.gmra.mrb[0].mxu0 %v674
      %v875 = vpop.f32.mrb[0].mxu0
      %v876 = vadd.f32 %v632, %v875
      %v877 = vpop.f32.mrb[0].mxu0
      %v878 = vadd.f32 %v636, %v877
      %879 = vmatprep.mubr.f32.mxu0 0.0
      %880 = vmatmul.mubr.f32.gmra.mrb[0].mxu0 %v677
      %v881 = vpop.f32.mrb[0].mxu0
      %v882 = vadd.f32 %v632, %v881
      %v883 = vpop.f32.mrb[0].mxu0
      %v884 = vadd.f32 %v636, %v883
      %885 = vmatprep.mubr.f32.mxu0 0.0
      %886 = vmatmul.mubr.f32.gmra.mrb[0].mxu0 %v680
      %v887 = vpop.f32.mrb[0].mxu0
      %v888 = vadd.f32 %v632, %v887
      %v889 = vpop.f32.mrb[0].mxu0
      %v890 = vadd.f32 %v636, %v889
      %891 = vmatprep.mubr.f32.mxu0 0.0
      %892 = vmatmul.mubr.f32.gmra.mrb[0].mxu0 %v683
      %v893 = vpop.f32.mrb[0].mxu0
      %v894 = vadd.f32 %v632, %v893
      %v895 = vpop.f32.mrb[0].mxu0
      %v896 = vadd.f32 %v636, %v895
      %897 = vmatprep.mubr.f32.mxu0 0.0
      %898 = vmatmul.mubr.f32.gmra.mrb[0].mxu0 %v686
      %v899 = vpop.f32.mrb[0].mxu0
      %v900 = vadd.f32 %v632, %v899
      %v901 = vpop.f32.mrb[0].mxu0
      %v902 = vadd.f32 %v636, %v901
      %903 = vmatprep.mubr.f32.mxu0 0.0
      %904 = vmatmul.mubr.f32.gmra.mrb[0].mxu0 %v689
      %v905 = vpop.f32.mrb[0].mxu0
      %v906 = vadd.f32 %v632, %v905
      %v907 = vpop.f32.mrb[0].mxu0
      %v908 = vadd.f32 %v636, %v907
      %909 = vmatprep.mubr.f32.mxu0 0.0
      %910 = vmatmul.mubr.f32.gmra.mrb[0].mxu0 %v692
      %v911 = vpop.f32.mrb[0].mxu0
      %v912 = vadd.f32 %v632, %v911
      %v913 = vpop.f32.mrb[0].mxu0
      %v914 = vadd.f32 %v636, %v913
      %915 = vmatprep.mubr.f32.mxu0 0.0
      %916 = vmatmul.mubr.f32.gmra.mrb[0].mxu0 %v695
      %v917 = vpop.f32.mrb[0].mxu0
      %v918 = vadd.f32 %v632, %v917
      %v919 = vpop.f32.mrb[0].mxu0
      %v920 = vadd.f32 %v636, %v919
      %921 = vmatprep.mubr.f32.mxu0 0.0
      %922 = vmatmul.mubr.f32.gmra.mrb[0].mxu0 %v698
      %v923 = vpop.f32.mrb[0].mxu0
      %v924 = vadd.f32 %v632, %v923
      %v925 = vpop.f32.mrb[0].mxu0
      %v926 = vadd.f32 %v636, %v925
      %927 = vmatprep.mubr.f32.mxu0 0.0
      %928 = vmatmul.mubr.f32.gmra.mrb[0].mxu0 %v701
      %v929 = vpop.f32.mrb[0].mxu0
      %v930 = vadd.f32 %v632, %v929
      %v931 = vpop.f32.mrb[0].mxu0
      %v932 = vadd.f32 %v636, %v931
      %933 = vmatprep.mubr.f32.mxu0 0.0
      %934 = vmatmul.mubr.f32.gmra.mrb[0].mxu0 %v704
      %v935 = vpop.f32.mrb[0].mxu0
      %v936 = vadd.f32 %v632, %v935
      %v937 = vpop.f32.mrb[0].mxu0
      %v938 = vadd.f32 %v636, %v937
      %939 = vmatprep.mubr.f32.mxu0 0.0
      %940 = vmatmul.mubr.f32.gmra.mrb[0].mxu0 %v707
      %v941 = vpop.f32.mrb[0].mxu0
      %v942 = vadd.f32 %v632, %v941
      %v943 = vpop.f32.mrb[0].mxu0
      %v944 = vadd.f32 %v636, %v943
      %945 = vmatprep.mubr.f32.mxu0 0.0
      %946 = vmatmul.mubr.f32.gmra.mrb[0].mxu0 %v710
      %v947 = vpop.f32.mrb[0].mxu0
      %v948 = vadd.f32 %v632, %v947
      %v949 = vpop.f32.mrb[0].mxu0
      %v950 = vadd.f32 %v636, %v949
      %951 = vmatprep.mubr.f32.mxu0 0.0
      %952 = vmatmul.mubr.f32.gmra.mrb[0].mxu0 %v713
      %v953 = vpop.f32.mrb[0].mxu0
      %v954 = vadd.f32 %v632, %v953
      %v955 = vpop.f32.mrb[0].mxu0
      %v956 = vadd.f32 %v636, %v955
      %957 = vmatprep.mubr.f32.mxu0 0.0
      %958 = vmatmul.mubr.f32.gmra.mrb[0].mxu0 %v716
      %v959 = vpop.f32.mrb[0].mxu0
      %v960 = vadd.f32 %v632, %v959
      %v961 = vpop.f32.mrb[0].mxu0
      %v962 = vadd.f32 %v636, %v961
      %963 = vmatprep.mubr.f32.mxu0 0.0
      %964 = vmatmul.mubr.f32.gmra.mrb[0].mxu0 %v719
      %v965 = vpop.f32.mrb[0].mxu0
      %v966 = vadd.f32 %v632, %v965
      %v967 = vpop.f32.mrb[0].mxu0
      %v968 = vadd.f32 %v636, %v967
      %969 = vmatprep.mubr.f32.mxu0 0.0
      %970 = vmatmul.mubr.f32.gmra.mrb[0].mxu0 %v722
      %v971 = vpop.f32.mrb[0].mxu0
      %v972 = vadd.f32 %v632, %v971
      %v973 = vpop.f32.mrb[0].mxu0
      %v974 = vadd.f32 %v636, %v973
      %975 = vmatprep.mubr.f32.mxu0 0.0
      %976 = vmatmul.mubr.f32.gmra.mrb[0].mxu0 %v725
      %v977 = vpop.f32.mrb[0].mxu0
      %v978 = vadd.f32 %v632, %v977
      %v979 = vpop.f32.mrb[0].mxu0
      %v980 = vadd.f32 %v636, %v979
      %981 = vmatprep.mubr.f32.mxu0 0.0
      %982 = vmatmul.mubr.f32.gmra.mrb[0].mxu0 %v728
      %v983 = vpop.f32.mrb[0].mxu0
      %v984 = vadd.f32 %v632, %v983
      %v985 = vpop.f32.mrb[0].mxu0
      %v986 = vadd.f32 %v636, %v985
      %987 = vmatprep.mubr.f32.mxu0 0.0
      %988 = vmatmul.mubr.f32.gmra.mrb[0].mxu0 %v731
      %v989 = vpop.f32.mrb[0].mxu0
      %v990 = vadd.f32 %v632, %v989
      %v991 = vpop.f32.mrb[0].mxu0
      %v992 = vadd.f32 %v636, %v991
      %993 = vmatprep.mubr.f32.mxu0 0.0
      %994 = vmatmul.mubr.f32.gmra.mrb[0].mxu0 %v734
      %v995 = vpop.f32.mrb[0].mxu0
      %v996 = vadd.f32 %v632, %v995
      %v997 = vpop.f32.mrb[0].mxu0
      %v998 = vadd.f32 %v636, %v997
      %999 = vdwg.mxu0
      %v1000 = vmul.f32 %v555, %v810
      %v1001 = vmul.f32 %v556, %v816
      %v1002 = vmul.f32 %v557, %v822
      %v1003 = vmul.f32 %v558, %v828
      %v1004 = vmul.f32 %v559, %v834
      %v1005 = vmul.f32 %v560, %v840
      %v1006 = vmul.f32 %v561, %v846
      %v1007 = vmul.f32 %v562, %v852
      %v1008 = vmul.f32 %v563, %v858
      %v1009 = vmul.f32 %v564, %v864
      %v1010 = vmul.f32 %v565, %v870
      %v1011 = vmul.f32 %v566, %v876
      %v1012 = vmul.f32 %v567, %v882
      %v1013 = vmul.f32 %v568, %v888
      %v1014 = vmul.f32 %v569, %v894
      %v1015 = vmul.f32 %v570, %v900
      %v1016 = vmul.f32 %v571, %v906
      %v1017 = vmul.f32 %v572, %v912
      %v1018 = vmul.f32 %v573, %v918
      %v1019 = vmul.f32 %v574, %v924
      %v1020 = vmul.f32 %v575, %v930
      %v1021 = vmul.f32 %v576, %v936
      %v1022 = vmul.f32 %v577, %v942
      %v1023 = vmul.f32 %v578, %v948
      %v1024 = vmul.f32 %v579, %v954
      %v1025 = vmul.f32 %v580, %v960
      %v1026 = vmul.f32 %v581, %v966
      %v1027 = vmul.f32 %v582, %v972
      %v1028 = vmul.f32 %v583, %v978
      %v1029 = vmul.f32 %v584, %v984
      %v1030 = vmul.f32 %v585, %v990
      %v1031 = vmul.f32 %v586, %v996
      %v1032 = vadd.f32 %v1000, %v812
      %v1033 = vadd.f32 %v1001, %v818
      %v1034 = vadd.f32 %v1002, %v824
      %v1035 = vadd.f32 %v1003, %v830
      %v1036 = vadd.f32 %v1004, %v836
      %v1037 = vadd.f32 %v1005, %v842
      %v1038 = vadd.f32 %v1006, %v848
      %v1039 = vadd.f32 %v1007, %v854
      %v1040 = vadd.f32 %v1008, %v860
      %v1041 = vadd.f32 %v1009, %v866
      %v1042 = vadd.f32 %v1010, %v872
      %v1043 = vadd.f32 %v1011, %v878
      %v1044 = vadd.f32 %v1012, %v884
      %v1045 = vadd.f32 %v1013, %v890
      %v1046 = vadd.f32 %v1014, %v896
      %v1047 = vadd.f32 %v1015, %v902
      %v1048 = vadd.f32 %v1016, %v908
      %v1049 = vadd.f32 %v1017, %v914
      %v1050 = vadd.f32 %v1018, %v920
      %v1051 = vadd.f32 %v1019, %v926
      %v1052 = vadd.f32 %v1020, %v932
      %v1053 = vadd.f32 %v1021, %v938
      %v1054 = vadd.f32 %v1022, %v944
      %v1055 = vadd.f32 %v1023, %v950
      %v1056 = vadd.f32 %v1024, %v956
      %v1057 = vadd.f32 %v1025, %v962
      %v1058 = vadd.f32 %v1026, %v968
      %v1059 = vadd.f32 %v1027, %v974
      %v1060 = vadd.f32 %v1028, %v980
      %v1061 = vadd.f32 %v1029, %v986
      %v1062 = vadd.f32 %v1030, %v992
      %v1063 = vadd.f32 %v1031, %v998
      %v1064 = vmax.f32 %v1032, 0.0
      %v1065 = vmax.f32 %v1033, 0.0
      %v1066 = vmax.f32 %v1034, 0.0
      %v1067 = vmax.f32 %v1035, 0.0
      %v1068 = vmax.f32 %v1036, 0.0
      %v1069 = vmax.f32 %v1037, 0.0
      %v1070 = vmax.f32 %v1038, 0.0
      %v1071 = vmax.f32 %v1039, 0.0
      %v1072 = vmax.f32 %v1040, 0.0
      %v1073 = vmax.f32 %v1041, 0.0
      %v1074 = vmax.f32 %v1042, 0.0
      %v1075 = vmax.f32 %v1043, 0.0
      %v1076 = vmax.f32 %v1044, 0.0
      %v1077 = vmax.f32 %v1045, 0.0
      %v1078 = vmax.f32 %v1046, 0.0
      %v1079 = vmax.f32 %v1047, 0.0
      %v1080 = vmax.f32 %v1048, 0.0
      %v1081 = vmax.f32 %v1049, 0.0
      %v1082 = vmax.f32 %v1050, 0.0
      %v1083 = vmax.f32 %v1051, 0.0
      %v1084 = vmax.f32 %v1052, 0.0
      %v1085 = vmax.f32 %v1053, 0.0
      %v1086 = vmax.f32 %v1054, 0.0
      %v1087 = vmax.f32 %v1055, 0.0
      %v1088 = vmax.f32 %v1056, 0.0
      %v1089 = vmax.f32 %v1057, 0.0
      %v1090 = vmax.f32 %v1058, 0.0
      %v1091 = vmax.f32 %v1059, 0.0
      %v1092 = vmax.f32 %v1060, 0.0
      %v1093 = vmax.f32 %v1061, 0.0
      %v1094 = vmax.f32 %v1062, 0.0
      %v1095 = vmax.f32 %v1063, 0.0
      %v1096 = vpack.c.bf16 %v1065, %v1064
      %v1097 = vpack.c.bf16 %v1067, %v1066
      %v1098 = vpack.c.bf16 %v1069, %v1068
      %v1099 = vpack.c.bf16 %v1071, %v1070
      %v1100 = vpack.c.bf16 %v1073, %v1072
      %v1101 = vpack.c.bf16 %v1075, %v1074
      %v1102 = vpack.c.bf16 %v1077, %v1076
      %v1103 = vpack.c.bf16 %v1079, %v1078
      %v1104 = vpack.c.bf16 %v1081, %v1080
      %v1105 = vpack.c.bf16 %v1083, %v1082
      %v1106 = vpack.c.bf16 %v1085, %v1084
      %v1107 = vpack.c.bf16 %v1087, %v1086
      %v1108 = vpack.c.bf16 %v1089, %v1088
      %v1109 = vpack.c.bf16 %v1091, %v1090
      %v1110 = vpack.c.bf16 %v1093, %v1092
      %v1111 = vpack.c.bf16 %v1095, %v1094
      %v1112 = vld [vmem:[%s4] sm:$0xf]
      %v1113 = vld [vmem:[%s4 + $0x4] sm:$0xf]
      %v1114 = vld [vmem:[%s4 + $0x8] sm:$0xf]
      %v1115 = vld [vmem:[%s4 + $0xc] sm:$0xf]
      %v1116 = vld [vmem:[%s4 + $0x10] sm:$0xf]
      %v1117 = vld [vmem:[%s4 + $0x14] sm:$0xf]
      %v1118 = vld [vmem:[%s4 + $0x18] sm:$0xf]
      %v1119 = vld [vmem:[%s4 + $0x1c] sm:$0xf]
      %v1120 = vld [vmem:[%s4 + $0x20] sm:$0xf]
      %v1121 = vld [vmem:[%s4 + $0x24] sm:$0xf]
      %v1122 = vld [vmem:[%s4 + $0x28] sm:$0xf]
      %v1123 = vld [vmem:[%s4 + $0x2c] sm:$0xf]
      %v1124 = vld [vmem:[%s4 + $0x30] sm:$0xf]
      %v1125 = vld [vmem:[%s4 + $0x34] sm:$0xf]
      %v1126 = vld [vmem:[%s4 + $0x38] sm:$0xf]
      %v1127 = vld [vmem:[%s4 + $0x3c] sm:$0xf]
      %v1128 = vld [vmem:[%s5] sm:$0x1]
      %v1130 = vlaneseq
      %v1131 = vshrl.u32 %v1130, 7
      %v1132 = vsub.s32 0, %v1131
      %v1133 = vrot.slane %v1128, %v1132
      %v1151 = vunpack.c.l.b16 %v1112
      %v1152 = vunpack.c.l.b16 %v1113
      %v1153 = vunpack.c.l.b16 %v1114
      %v1154 = vunpack.c.l.b16 %v1115
      %v1155 = vunpack.c.l.b16 %v1116
      %v1156 = vunpack.c.l.b16 %v1117
      %v1157 = vunpack.c.l.b16 %v1118
      %v1158 = vunpack.c.l.b16 %v1119
      %v1159 = vunpack.c.l.b16 %v1120
      %v1160 = vunpack.c.l.b16 %v1121
      %v1161 = vunpack.c.l.b16 %v1122
      %v1162 = vunpack.c.l.b16 %v1123
      %v1163 = vunpack.c.l.b16 %v1124
      %v1164 = vunpack.c.l.b16 %v1125
      %v1165 = vunpack.c.l.b16 %v1126
      %v1166 = vunpack.c.l.b16 %v1127
      %v1167 = vpack.c.b16 %v1152, %v1151
      %v1168 = vpack.c.b16 %v1154, %v1153
      %v1169 = vpack.c.b16 %v1156, %v1155
      %v1170 = vpack.c.b16 %v1158, %v1157
      %v1171 = vpack.c.b16 %v1160, %v1159
      %v1172 = vpack.c.b16 %v1162, %v1161
      %v1173 = vpack.c.b16 %v1164, %v1163
      %v1174 = vpack.c.b16 %v1166, %v1165
      %1183 = vmatprep.subr.bf16.mxu0 0
      %1184 = vmatpush1.bf16.msra.mxu0 %v1167
      %1185 = vmatprep.subr.bf16.mxu0 0
      %1186 = vmatpush1.bf16.msra.mxu0 %v1168
      %1187 = vmatprep.subr.bf16.mxu0 0
      %1188 = vmatpush1.bf16.msra.mxu0 %v1169
      %1189 = vmatprep.subr.bf16.mxu0 0
      %1190 = vmatpush1.bf16.msra.mxu0 %v1170
      %1191 = vmatprep.subr.bf16.mxu0 0
      %1192 = vmatpush1.bf16.msra.mxu0 %v1171
      %1193 = vmatprep.subr.bf16.mxu0 0
      %1194 = vmatpush1.bf16.msra.mxu0 %v1172
      %1195 = vmatprep.subr.bf16.mxu0 0
      %1196 = vmatpush1.bf16.msra.mxu0 %v1173
      %1197 = vmatprep.subr.bf16.mxu0 0
      %1198 = vmatpush1.bf16.msra.mxu0 %v1174
      %1199 = vmatprep.subr.bf16.mxu0 0
      %1200 = vmatpush1.bf16.msra.mxu0 0
      %1201 = vmatprep.subr.bf16.mxu0 0
      %1202 = vmatpush1.bf16.msra.mxu0 0
      %1203 = vmatprep.subr.bf16.mxu0 0
      %1204 = vmatpush1.bf16.msra.mxu0 0
      %1205 = vmatprep.subr.bf16.mxu0 0
      %1206 = vmatpush1.bf16.msra.mxu0 0
      %1207 = vmatprep.subr.bf16.mxu0 0
      %1208 = vmatpush1.bf16.msra.mxu0 0
      %1209 = vmatprep.subr.bf16.mxu0 0
      %1210 = vmatpush1.bf16.msra.mxu0 0
      %1211 = vmatprep.subr.bf16.mxu0 0
      %1212 = vmatpush1.bf16.msra.mxu0 0
      %1213 = vmatprep.subr.bf16.mxu0 0
      %1214 = vmatpush1.bf16.msra.mxu0 0
      %1215 = vmatprep.mubr.bf16.mxu0 0
      %1216 = vmatmul.mubr.bf16.gmra.mrb[0].mxu0 %v1096
      %v1217 = vpop.f32.mrb[0].mxu0
      %v1218 = vadd.f32 %v1133, %v1217
      %v1219 = vpop.f32.mrb[0].mxu0
      %v1220 = vpop.f32.mrb[0].mxu0
      %v1221 = vadd.f32 %v1133, %v1220
      %v1222 = vpop.f32.mrb[0].mxu0
      %1223 = vmatprep.mubr.bf16.mxu0 0
      %1224 = vmatmul.mubr.bf16.gmra.mrb[0].mxu0 %v1097
      %v1225 = vpop.f32.mrb[0].mxu0
      %v1226 = vadd.f32 %v1133, %v1225
      %v1227 = vpop.f32.mrb[0].mxu0
      %v1228 = vpop.f32.mrb[0].mxu0
      %v1229 = vadd.f32 %v1133, %v1228
      %v1230 = vpop.f32.mrb[0].mxu0
      %1231 = vmatprep.mubr.bf16.mxu0 0
      %1232 = vmatmul.mubr.bf16.gmra.mrb[0].mxu0 %v1098
      %v1233 = vpop.f32.mrb[0].mxu0
      %v1234 = vadd.f32 %v1133, %v1233
      %v1235 = vpop.f32.mrb[0].mxu0
      %v1236 = vpop.f32.mrb[0].mxu0
      %v1237 = vadd.f32 %v1133, %v1236
      %v1238 = vpop.f32.mrb[0].mxu0
      %1239 = vmatprep.mubr.bf16.mxu0 0
      %1240 = vmatmul.mubr.bf16.gmra.mrb[0].mxu0 %v1099
      %v1241 = vpop.f32.mrb[0].mxu0
      %v1242 = vadd.f32 %v1133, %v1241
      %v1243 = vpop.f32.mrb[0].mxu0
      %v1244 = vpop.f32.mrb[0].mxu0
      %v1245 = vadd.f32 %v1133, %v1244
      %v1246 = vpop.f32.mrb[0].mxu0
      %1247 = vmatprep.mubr.bf16.mxu0 0
      %1248 = vmatmul.mubr.bf16.gmra.mrb[0].mxu0 %v1100
      %v1249 = vpop.f32.mrb[0].mxu0
      %v1250 = vadd.f32 %v1133, %v1249
      %v1251 = vpop.f32.mrb[0].mxu0
      %v1252 = vpop.f32.mrb[0].mxu0
      %v1253 = vadd.f32 %v1133, %v1252
      %v1254 = vpop.f32.mrb[0].mxu0
      %1255 = vmatprep.mubr.bf16.mxu0 0
      %1256 = vmatmul.mubr.bf16.gmra.mrb[0].mxu0 %v1101
      %v1257 = vpop.f32.mrb[0].mxu0
      %v1258 = vadd.f32 %v1133, %v1257
      %v1259 = vpop.f32.mrb[0].mxu0
      %v1260 = vpop.f32.mrb[0].mxu0
      %v1261 = vadd.f32 %v1133, %v1260
      %v1262 = vpop.f32.mrb[0].mxu0
      %1263 = vmatprep.mubr.bf16.mxu0 0
      %1264 = vmatmul.mubr.bf16.gmra.mrb[0].mxu0 %v1102
      %v1265 = vpop.f32.mrb[0].mxu0
      %v1266 = vadd.f32 %v1133, %v1265
      %v1267 = vpop.f32.mrb[0].mxu0
      %v1268 = vpop.f32.mrb[0].mxu0
      %v1269 = vadd.f32 %v1133, %v1268
      %v1270 = vpop.f32.mrb[0].mxu0
      %1271 = vmatprep.mubr.bf16.mxu0 0
      %1272 = vmatmul.mubr.bf16.gmra.mrb[0].mxu0 %v1103
      %v1273 = vpop.f32.mrb[0].mxu0
      %v1274 = vadd.f32 %v1133, %v1273
      %v1275 = vpop.f32.mrb[0].mxu0
      %v1276 = vpop.f32.mrb[0].mxu0
      %v1277 = vadd.f32 %v1133, %v1276
      %v1278 = vpop.f32.mrb[0].mxu0
      %1279 = vmatprep.mubr.bf16.mxu0 0
      %1280 = vmatmul.mubr.bf16.gmra.mrb[0].mxu0 %v1104
      %v1281 = vpop.f32.mrb[0].mxu0
      %v1282 = vadd.f32 %v1133, %v1281
      %v1283 = vpop.f32.mrb[0].mxu0
      %v1284 = vpop.f32.mrb[0].mxu0
      %v1285 = vadd.f32 %v1133, %v1284
      %v1286 = vpop.f32.mrb[0].mxu0
      %1287 = vmatprep.mubr.bf16.mxu0 0
      %1288 = vmatmul.mubr.bf16.gmra.mrb[0].mxu0 %v1105
      %v1289 = vpop.f32.mrb[0].mxu0
      %v1290 = vadd.f32 %v1133, %v1289
      %v1291 = vpop.f32.mrb[0].mxu0
      %v1292 = vpop.f32.mrb[0].mxu0
      %v1293 = vadd.f32 %v1133, %v1292
      %v1294 = vpop.f32.mrb[0].mxu0
      %1295 = vmatprep.mubr.bf16.mxu0 0
      %1296 = vmatmul.mubr.bf16.gmra.mrb[0].mxu0 %v1106
      %v1297 = vpop.f32.mrb[0].mxu0
      %v1298 = vadd.f32 %v1133, %v1297
      %v1299 = vpop.f32.mrb[0].mxu0
      %v1300 = vpop.f32.mrb[0].mxu0
      %v1301 = vadd.f32 %v1133, %v1300
      %v1302 = vpop.f32.mrb[0].mxu0
      %1303 = vmatprep.mubr.bf16.mxu0 0
      %1304 = vmatmul.mubr.bf16.gmra.mrb[0].mxu0 %v1107
      %v1305 = vpop.f32.mrb[0].mxu0
      %v1306 = vadd.f32 %v1133, %v1305
      %v1307 = vpop.f32.mrb[0].mxu0
      %v1308 = vpop.f32.mrb[0].mxu0
      %v1309 = vadd.f32 %v1133, %v1308
      %v1310 = vpop.f32.mrb[0].mxu0
      %1311 = vmatprep.mubr.bf16.mxu0 0
      %1312 = vmatmul.mubr.bf16.gmra.mrb[0].mxu0 %v1108
      %v1313 = vpop.f32.mrb[0].mxu0
      %v1314 = vadd.f32 %v1133, %v1313
      %v1315 = vpop.f32.mrb[0].mxu0
      %v1316 = vpop.f32.mrb[0].mxu0
      %v1317 = vadd.f32 %v1133, %v1316
      %v1318 = vpop.f32.mrb[0].mxu0
      %1319 = vmatprep.mubr.bf16.mxu0 0
      %1320 = vmatmul.mubr.bf16.gmra.mrb[0].mxu0 %v1109
      %v1321 = vpop.f32.mrb[0].mxu0
      %v1322 = vadd.f32 %v1133, %v1321
      %v1323 = vpop.f32.mrb[0].mxu0
      %v1324 = vpop.f32.mrb[0].mxu0
      %v1325 = vadd.f32 %v1133, %v1324
      %v1326 = vpop.f32.mrb[0].mxu0
      %1327 = vmatprep.mubr.bf16.mxu0 0
      %1328 = vmatmul.mubr.bf16.gmra.mrb[0].mxu0 %v1110
      %v1329 = vpop.f32.mrb[0].mxu0
      %v1330 = vadd.f32 %v1133, %v1329
      %v1331 = vpop.f32.mrb[0].mxu0
      %v1332 = vpop.f32.mrb[0].mxu0
      %v1333 = vadd.f32 %v1133, %v1332
      %v1334 = vpop.f32.mrb[0].mxu0
      %1335 = vmatprep.mubr.bf16.mxu0 0
      %1336 = vmatmul.mubr.bf16.gmra.mrb[0].mxu0 %v1111
      %v1337 = vpop.f32.mrb[0].mxu0
      %v1338 = vadd.f32 %v1133, %v1337
      %v1339 = vpop.f32.mrb[0].mxu0
      %v1340 = vpop.f32.mrb[0].mxu0
      %v1341 = vadd.f32 %v1133, %v1340
      %v1342 = vpop.f32.mrb[0].mxu0
      %1343 = vdwg.mxu0
      %v1344 = vadd.f32 %v1218, %v1221
      %v1345 = vadd.f32 %v1344, %v1226
      %v1346 = vadd.f32 %v1345, %v1229
      %v1347 = vadd.f32 %v1346, %v1234
      %v1348 = vadd.f32 %v1347, %v1237
      %v1349 = vadd.f32 %v1348, %v1242
      %v1350 = vadd.f32 %v1349, %v1245
      %v1351 = vadd.f32 %v1350, %v1250
      %v1352 = vadd.f32 %v1351, %v1253
      %v1353 = vadd.f32 %v1352, %v1258
      %v1354 = vadd.f32 %v1353, %v1261
      %v1355 = vadd.f32 %v1354, %v1266
      %v1356 = vadd.f32 %v1355, %v1269
      %v1357 = vadd.f32 %v1356, %v1274
      %v1358 = vadd.f32 %v1357, %v1277
      %v1359 = vadd.f32 %v1358, %v1282
      %v1360 = vadd.f32 %v1359, %v1285
      %v1361 = vadd.f32 %v1360, %v1290
      %v1362 = vadd.f32 %v1361, %v1293
      %v1363 = vadd.f32 %v1362, %v1298
      %v1364 = vadd.f32 %v1363, %v1301
      %v1365 = vadd.f32 %v1364, %v1306
      %v1366 = vadd.f32 %v1365, %v1309
      %v1367 = vadd.f32 %v1366, %v1314
      %v1368 = vadd.f32 %v1367, %v1317
      %v1369 = vadd.f32 %v1368, %v1322
      %v1370 = vadd.f32 %v1369, %v1325
      %v1371 = vadd.f32 %v1370, %v1330
      %v1372 = vadd.f32 %v1371, %v1333
      %v1373 = vadd.f32 %v1372, %v1338
      %v1374 = vadd.f32 %v1373, %v1341
      %v1375 = vrot.slane %v1374, 4
      %v1376 = vadd.f32 %v1374, %v1375
      %v1377 = vrot.slane %v1376, 2
      %v1378 = vadd.f32 %v1376, %v1377
      %v1379 = vrot.slane %v1378, 1
      %v1380 = vadd.f32 %v1378, %v1379
      %v1381 = vmul.f32 %v1380, 0.00390625
      %v1382 = vsub.f32 %v1218, %v1381
      %v1383 = vsub.f32 %v1221, %v1381
      %v1384 = vsub.f32 %v1226, %v1381
      %v1385 = vsub.f32 %v1229, %v1381
      %v1386 = vsub.f32 %v1234, %v1381
      %v1387 = vsub.f32 %v1237, %v1381
      %v1388 = vsub.f32 %v1242, %v1381
      %v1389 = vsub.f32 %v1245, %v1381
      %v1390 = vsub.f32 %v1250, %v1381
      %v1391 = vsub.f32 %v1253, %v1381
      %v1392 = vsub.f32 %v1258, %v1381
      %v1393 = vsub.f32 %v1261, %v1381
      %v1394 = vsub.f32 %v1266, %v1381
      %v1395 = vsub.f32 %v1269, %v1381
      %v1396 = vsub.f32 %v1274, %v1381
      %v1397 = vsub.f32 %v1277, %v1381
      %v1398 = vsub.f32 %v1282, %v1381
      %v1399 = vsub.f32 %v1285, %v1381
      %v1400 = vsub.f32 %v1290, %v1381
      %v1401 = vsub.f32 %v1293, %v1381
      %v1402 = vsub.f32 %v1298, %v1381
      %v1403 = vsub.f32 %v1301, %v1381
      %v1404 = vsub.f32 %v1306, %v1381
      %v1405 = vsub.f32 %v1309, %v1381
      %v1406 = vsub.f32 %v1314, %v1381
      %v1407 = vsub.f32 %v1317, %v1381
      %v1408 = vsub.f32 %v1322, %v1381
      %v1409 = vsub.f32 %v1325, %v1381
      %v1410 = vsub.f32 %v1330, %v1381
      %v1411 = vsub.f32 %v1333, %v1381
      %v1412 = vsub.f32 %v1338, %v1381
      %v1413 = vsub.f32 %v1341, %v1381
      %v1414 = vmul.f32 %v1382, %v1382
      %v1415 = vmul.f32 %v1383, %v1383
      %v1416 = vmul.f32 %v1384, %v1384
      %v1417 = vmul.f32 %v1385, %v1385
      %v1418 = vmul.f32 %v1386, %v1386
      %v1419 = vmul.f32 %v1387, %v1387
      %v1420 = vmul.f32 %v1388, %v1388
      %v1421 = vmul.f32 %v1389, %v1389
      %v1422 = vmul.f32 %v1390, %v1390
      %v1423 = vmul.f32 %v1391, %v1391
      %v1424 = vmul.f32 %v1392, %v1392
      %v1425 = vmul.f32 %v1393, %v1393
      %v1426 = vmul.f32 %v1394, %v1394
      %v1427 = vmul.f32 %v1395, %v1395
      %v1428 = vmul.f32 %v1396, %v1396
      %v1429 = vmul.f32 %v1397, %v1397
      %v1430 = vmul.f32 %v1398, %v1398
      %v1431 = vmul.f32 %v1399, %v1399
      %v1432 = vmul.f32 %v1400, %v1400
      %v1433 = vmul.f32 %v1401, %v1401
      %v1434 = vmul.f32 %v1402, %v1402
      %v1435 = vmul.f32 %v1403, %v1403
      %v1436 = vmul.f32 %v1404, %v1404
      %v1437 = vmul.f32 %v1405, %v1405
      %v1438 = vmul.f32 %v1406, %v1406
      %v1439 = vmul.f32 %v1407, %v1407
      %v1440 = vmul.f32 %v1408, %v1408
      %v1441 = vmul.f32 %v1409, %v1409
      %v1442 = vmul.f32 %v1410, %v1410
      %v1443 = vmul.f32 %v1411, %v1411
      %v1444 = vmul.f32 %v1412, %v1412
      %v1445 = vmul.f32 %v1413, %v1413
      %v1446 = vadd.f32 %v1414, %v1415
      %v1447 = vadd.f32 %v1446, %v1416
      %v1448 = vadd.f32 %v1447, %v1417
      %v1449 = vadd.f32 %v1448, %v1418
      %v1450 = vadd.f32 %v1449, %v1419
      %v1451 = vadd.f32 %v1450, %v1420
      %v1452 = vadd.f32 %v1451, %v1421
      %v1453 = vadd.f32 %v1452, %v1422
      %v1454 = vadd.f32 %v1453, %v1423
      %v1455 = vadd.f32 %v1454, %v1424
      %v1456 = vadd.f32 %v1455, %v1425
      %v1457 = vadd.f32 %v1456, %v1426
      %v1458 = vadd.f32 %v1457, %v1427
      %v1459 = vadd.f32 %v1458, %v1428
      %v1460 = vadd.f32 %v1459, %v1429
      %v1461 = vadd.f32 %v1460, %v1430
      %v1462 = vadd.f32 %v1461, %v1431
      %v1463 = vadd.f32 %v1462, %v1432
      %v1464 = vadd.f32 %v1463, %v1433
      %v1465 = vadd.f32 %v1464, %v1434
      %v1466 = vadd.f32 %v1465, %v1435
      %v1467 = vadd.f32 %v1466, %v1436
      %v1468 = vadd.f32 %v1467, %v1437
      %v1469 = vadd.f32 %v1468, %v1438
      %v1470 = vadd.f32 %v1469, %v1439
      %v1471 = vadd.f32 %v1470, %v1440
      %v1472 = vadd.f32 %v1471, %v1441
      %v1473 = vadd.f32 %v1472, %v1442
      %v1474 = vadd.f32 %v1473, %v1443
      %v1475 = vadd.f32 %v1474, %v1444
      %v1476 = vadd.f32 %v1475, %v1445
      %v1477 = vrot.slane %v1476, 4
      %v1478 = vadd.f32 %v1476, %v1477
      %v1479 = vrot.slane %v1478, 2
      %v1480 = vadd.f32 %v1478, %v1479
      %v1481 = vrot.slane %v1480, 1
      %v1482 = vadd.f32 %v1480, %v1481
      %v1483 = vmul.f32 %v1482, 0.00390625
      %v1484 = vadd.f32 %v1483, 1e-05
      %v1485 = vrsqrt.pop %v1484
      %v1486 = vmul.f32 %v1382, %v1485
      %v1487 = vmul.f32 %v1383, %v1485
      %v1488 = vmul.f32 %v1384, %v1485
      %v1489 = vmul.f32 %v1385, %v1485
      %v1490 = vmul.f32 %v1386, %v1485
      %v1491 = vmul.f32 %v1387, %v1485
      %v1492 = vmul.f32 %v1388, %v1485
      %v1493 = vmul.f32 %v1389, %v1485
      %v1494 = vmul.f32 %v1390, %v1485
      %v1495 = vmul.f32 %v1391, %v1485
      %v1496 = vmul.f32 %v1392, %v1485
      %v1497 = vmul.f32 %v1393, %v1485
      %v1498 = vmul.f32 %v1394, %v1485
      %v1499 = vmul.f32 %v1395, %v1485
      %v1500 = vmul.f32 %v1396, %v1485
      %v1501 = vmul.f32 %v1397, %v1485
      %v1502 = vmul.f32 %v1398, %v1485
      %v1503 = vmul.f32 %v1399, %v1485
      %v1504 = vmul.f32 %v1400, %v1485
      %v1505 = vmul.f32 %v1401, %v1485
      %v1506 = vmul.f32 %v1402, %v1485
      %v1507 = vmul.f32 %v1403, %v1485
      %v1508 = vmul.f32 %v1404, %v1485
      %v1509 = vmul.f32 %v1405, %v1485
      %v1510 = vmul.f32 %v1406, %v1485
      %v1511 = vmul.f32 %v1407, %v1485
      %v1512 = vmul.f32 %v1408, %v1485
      %v1513 = vmul.f32 %v1409, %v1485
      %v1514 = vmul.f32 %v1410, %v1485
      %v1515 = vmul.f32 %v1411, %v1485
      %v1516 = vmul.f32 %v1412, %v1485
      %v1517 = vmul.f32 %v1413, %v1485
      %v1518 = vld [vmem:[%s6] sm:$0xff]
      %v1519 = vld [vmem:[%s6 + $0x8] sm:$0xff]
      %v1520 = vld [vmem:[%s6 + $0x10] sm:$0xff]
      %v1521 = vld [vmem:[%s6 + $0x18] sm:$0xff]
      %v1522 = vld [vmem:[%s6 + $0x20] sm:$0xff]
      %v1523 = vld [vmem:[%s6 + $0x28] sm:$0xff]
      %v1524 = vld [vmem:[%s6 + $0x30] sm:$0xff]
      %v1525 = vld [vmem:[%s6 + $0x38] sm:$0xff]
      %v1526 = vld [vmem:[%s6 + $0x40] sm:$0xff]
      %v1527 = vld [vmem:[%s6 + $0x48] sm:$0xff]
      %v1528 = vld [vmem:[%s6 + $0x50] sm:$0xff]
      %v1529 = vld [vmem:[%s6 + $0x58] sm:$0xff]
      %v1530 = vld [vmem:[%s6 + $0x60] sm:$0x7]
      %v1531 = vld [vmem:[%s6 + $0x68] sm:$0x7]
      %v1532 = vld [vmem:[%s6 + $0x70] sm:$0x7]
      %v1533 = vld [vmem:[%s6 + $0x78] sm:$0x7]
      %v1534 = vld [vmem:[%s7] sm:$0xf]
      %v1536 = vlaneseq
      %v1537 = vshrl.u32 %v1536, 7
      %v1538 = vsub.s32 0, %v1537
      %v1539 = vrot.slane %v1534, %v1538
      %v1540 = vlaneseq
      %v1541 = vshrl.u32 %v1540, 7
      %v1542 = vsub.s32 1, %v1541
      %v1543 = vrot.slane %v1534, %v1542
      %v1544 = vlaneseq
      %v1545 = vshrl.u32 %v1544, 7
      %v1546 = vsub.s32 2, %v1545
      %v1547 = vrot.slane %v1534, %v1546
      %v1548 = vlaneseq
      %v1549 = vshrl.u32 %v1548, 7
      %v1550 = vsub.s32 3, %v1549
      %v1551 = vrot.slane %v1534, %v1550
      %v1557 = vsel %vm736, %v1530, 0
      %v1560 = vsel %vm736, %v1531, 0
      %v1563 = vsel %vm736, %v1532, 0
      %v1566 = vsel %vm736, %v1533, 0
      %1568 = vmatprep.subr.mxu0 %v1519
      %1569 = vmatpush1.msra.mxu0 %v1518
      %1570 = vmatprep.subr.mxu0 %v1523
      %1571 = vmatpush1.msra.mxu0 %v1522
      %1572 = vmatprep.subr.mxu0 %v1527
      %1573 = vmatpush1.msra.mxu0 %v1526
      %1574 = vmatprep.subr.mxu0 %v1560
      %1575 = vmatpush1.msra.mxu0 %v1557
      %1576 = vmatprep.subr.mxu0 0.0
      %1577 = vmatpush1.msra.mxu0 0.0
      %1578 = vmatprep.subr.mxu0 0.0
      %1579 = vmatpush1.msra.mxu0 0.0
      %1580 = vmatprep.subr.mxu0 0.0
      %1581 = vmatpush1.msra.mxu0 0.0
      %1582 = vmatprep.subr.mxu0 0.0
      %1583 = vmatpush1.msra.mxu0 0.0
      %1584 = vmatprep.subr.mxu0 0.0
      %1585 = vmatpush1.msra.mxu0 0.0
      %1586 = vmatprep.subr.mxu0 0.0
      %1587 = vmatpush1.msra.mxu0 0.0
      %1588 = vmatprep.subr.mxu0 0.0
      %1589 = vmatpush1.msra.mxu0 0.0
      %1590 = vmatprep.subr.mxu0 0.0
      %1591 = vmatpush1.msra.mxu0 0.0
      %1592 = vmatprep.subr.mxu0 0.0
      %1593 = vmatpush1.msra.mxu0 0.0
      %1594 = vmatprep.subr.mxu0 0.0
      %1595 = vmatpush1.msra.mxu0 0.0
      %1596 = vmatprep.subr.mxu0 0.0
      %1597 = vmatpush1.msra.mxu0 0.0
      %1598 = vmatprep.subr.mxu0 0.0
      %1599 = vmatpush1.msra.mxu0 0.0
      %1600 = vmatprep.subr.mxu0 0.0
      %1601 = vmatpush1.msra.mxu0 0.0
      %1602 = vmatprep.subr.mxu0 0.0
      %1603 = vmatpush1.msra.mxu0 0.0
      %1604 = vmatprep.subr.mxu0 0.0
      %1605 = vmatpush1.msra.mxu0 0.0
      %1606 = vmatprep.subr.mxu0 0.0
      %1607 = vmatpush1.msra.mxu0 0.0
      %1608 = vmatprep.subr.mxu0 0.0
      %1609 = vmatpush1.msra.mxu0 0.0
      %1610 = vmatprep.subr.mxu0 0.0
      %1611 = vmatpush1.msra.mxu0 0.0
      %1612 = vmatprep.subr.mxu0 0.0
      %1613 = vmatpush1.msra.mxu0 0.0
      %1614 = vmatprep.subr.mxu0 0.0
      %1615 = vmatpush1.msra.mxu0 0.0
      %1616 = vmatprep.subr.mxu0 0.0
      %1617 = vmatpush1.msra.mxu0 0.0
      %1618 = vmatprep.subr.mxu0 0.0
      %1619 = vmatpush1.msra.mxu0 0.0
      %1620 = vmatprep.subr.mxu0 0.0
      %1621 = vmatpush1.msra.mxu0 0.0
      %1622 = vmatprep.subr.mxu0 0.0
      %1623 = vmatpush1.msra.mxu0 0.0
      %1624 = vmatprep.subr.mxu0 0.0
      %1625 = vmatpush1.msra.mxu0 0.0
      %1626 = vmatprep.subr.mxu0 0.0
      %1627 = vmatpush1.msra.mxu0 0.0
      %1628 = vmatprep.subr.mxu0 0.0
      %1629 = vmatpush1.msra.mxu0 0.0
      %1630 = vmatprep.subr.mxu0 0.0
      %1631 = vmatpush1.msra.mxu0 0.0
      %1632 = vmatprep.mubr.f32.mxu0 0.0
      %1633 = vmatmul.mubr.f32.gmra.mrb[0].mxu0 %v641
      %v1634 = vpop.f32.mrb[0].mxu0
      %v1635 = vadd.f32 %v1539, %v1634
      %v1636 = vpop.f32.mrb[0].mxu0
      %v1637 = vadd.f32 %v1543, %v1636
      %1638 = vmatprep.mubr.f32.mxu0 0.0
      %1639 = vmatmul.mubr.f32.gmra.mrb[0].mxu0 %v644
      %v1640 = vpop.f32.mrb[0].mxu0
      %v1641 = vadd.f32 %v1539, %v1640
      %v1642 = vpop.f32.mrb[0].mxu0
      %v1643 = vadd.f32 %v1543, %v1642
      %1644 = vmatprep.mubr.f32.mxu0 0.0
      %1645 = vmatmul.mubr.f32.gmra.mrb[0].mxu0 %v647
      %v1646 = vpop.f32.mrb[0].mxu0
      %v1647 = vadd.f32 %v1539, %v1646
      %v1648 = vpop.f32.mrb[0].mxu0
      %v1649 = vadd.f32 %v1543, %v1648
      %1650 = vmatprep.mubr.f32.mxu0 0.0
      %1651 = vmatmul.mubr.f32.gmra.mrb[0].mxu0 %v650
      %v1652 = vpop.f32.mrb[0].mxu0
      %v1653 = vadd.f32 %v1539, %v1652
      %v1654 = vpop.f32.mrb[0].mxu0
      %v1655 = vadd.f32 %v1543, %v1654
      %1656 = vmatprep.mubr.f32.mxu0 0.0
      %1657 = vmatmul.mubr.f32.gmra.mrb[0].mxu0 %v653
      %v1658 = vpop.f32.mrb[0].mxu0
      %v1659 = vadd.f32 %v1539, %v1658
      %v1660 = vpop.f32.mrb[0].mxu0
      %v1661 = vadd.f32 %v1543, %v1660
      %1662 = vmatprep.mubr.f32.mxu0 0.0
      %1663 = vmatmul.mubr.f32.gmra.mrb[0].mxu0 %v656
      %v1664 = vpop.f32.mrb[0].mxu0
      %v1665 = vadd.f32 %v1539, %v1664
      %v1666 = vpop.f32.mrb[0].mxu0
      %v1667 = vadd.f32 %v1543, %v1666
      %1668 = vmatprep.mubr.f32.mxu0 0.0
      %1669 = vmatmul.mubr.f32.gmra.mrb[0].mxu0 %v659
      %v1670 = vpop.f32.mrb[0].mxu0
      %v1671 = vadd.f32 %v1539, %v1670
      %v1672 = vpop.f32.mrb[0].mxu0
      %v1673 = vadd.f32 %v1543, %v1672
      %1674 = vmatprep.mubr.f32.mxu0 0.0
      %1675 = vmatmul.mubr.f32.gmra.mrb[0].mxu0 %v662
      %v1676 = vpop.f32.mrb[0].mxu0
      %v1677 = vadd.f32 %v1539, %v1676
      %v1678 = vpop.f32.mrb[0].mxu0
      %v1679 = vadd.f32 %v1543, %v1678
      %1680 = vmatprep.mubr.f32.mxu0 0.0
      %1681 = vmatmul.mubr.f32.gmra.mrb[0].mxu0 %v665
      %v1682 = vpop.f32.mrb[0].mxu0
      %v1683 = vadd.f32 %v1539, %v1682
      %v1684 = vpop.f32.mrb[0].mxu0
      %v1685 = vadd.f32 %v1543, %v1684
      %1686 = vmatprep.mubr.f32.mxu0 0.0
      %1687 = vmatmul.mubr.f32.gmra.mrb[0].mxu0 %v668
      %v1688 = vpop.f32.mrb[0].mxu0
      %v1689 = vadd.f32 %v1539, %v1688
      %v1690 = vpop.f32.mrb[0].mxu0
      %v1691 = vadd.f32 %v1543, %v1690
      %1692 = vmatprep.mubr.f32.mxu0 0.0
      %1693 = vmatmul.mubr.f32.gmra.mrb[0].mxu0 %v671
      %v1694 = vpop.f32.mrb[0].mxu0
      %v1695 = vadd.f32 %v1539, %v1694
      %v1696 = vpop.f32.mrb[0].mxu0
      %v1697 = vadd.f32 %v1543, %v1696
      %1698 = vmatprep.mubr.f32.mxu0 0.0
      %1699 = vmatmul.mubr.f32.gmra.mrb[0].mxu0 %v674
      %v1700 = vpop.f32.mrb[0].mxu0
      %v1701 = vadd.f32 %v1539, %v1700
      %v1702 = vpop.f32.mrb[0].mxu0
      %v1703 = vadd.f32 %v1543, %v1702
      %1704 = vmatprep.mubr.f32.mxu0 0.0
      %1705 = vmatmul.mubr.f32.gmra.mrb[0].mxu0 %v677
      %v1706 = vpop.f32.mrb[0].mxu0
      %v1707 = vadd.f32 %v1539, %v1706
      %v1708 = vpop.f32.mrb[0].mxu0
      %v1709 = vadd.f32 %v1543, %v1708
      %1710 = vmatprep.mubr.f32.mxu0 0.0
      %1711 = vmatmul.mubr.f32.gmra.mrb[0].mxu0 %v680
      %v1712 = vpop.f32.mrb[0].mxu0
      %v1713 = vadd.f32 %v1539, %v1712
      %v1714 = vpop.f32.mrb[0].mxu0
      %v1715 = vadd.f32 %v1543, %v1714
      %1716 = vmatprep.mubr.f32.mxu0 0.0
      %1717 = vmatmul.mubr.f32.gmra.mrb[0].mxu0 %v683
      %v1718 = vpop.f32.mrb[0].mxu0
      %v1719 = vadd.f32 %v1539, %v1718
      %v1720 = vpop.f32.mrb[0].mxu0
      %v1721 = vadd.f32 %v1543, %v1720
      %1722 = vmatprep.mubr.f32.mxu0 0.0
      %1723 = vmatmul.mubr.f32.gmra.mrb[0].mxu0 %v686
      %v1724 = vpop.f32.mrb[0].mxu0
      %v1725 = vadd.f32 %v1539, %v1724
      %v1726 = vpop.f32.mrb[0].mxu0
      %v1727 = vadd.f32 %v1543, %v1726
      %1728 = vmatprep.mubr.f32.mxu0 0.0
      %1729 = vmatmul.mubr.f32.gmra.mrb[0].mxu0 %v689
      %v1730 = vpop.f32.mrb[0].mxu0
      %v1731 = vadd.f32 %v1539, %v1730
      %v1732 = vpop.f32.mrb[0].mxu0
      %v1733 = vadd.f32 %v1543, %v1732
      %1734 = vmatprep.mubr.f32.mxu0 0.0
      %1735 = vmatmul.mubr.f32.gmra.mrb[0].mxu0 %v692
      %v1736 = vpop.f32.mrb[0].mxu0
      %v1737 = vadd.f32 %v1539, %v1736
      %v1738 = vpop.f32.mrb[0].mxu0
      %v1739 = vadd.f32 %v1543, %v1738
      %1740 = vmatprep.mubr.f32.mxu0 0.0
      %1741 = vmatmul.mubr.f32.gmra.mrb[0].mxu0 %v695
      %v1742 = vpop.f32.mrb[0].mxu0
      %v1743 = vadd.f32 %v1539, %v1742
      %v1744 = vpop.f32.mrb[0].mxu0
      %v1745 = vadd.f32 %v1543, %v1744
      %1746 = vmatprep.mubr.f32.mxu0 0.0
      %1747 = vmatmul.mubr.f32.gmra.mrb[0].mxu0 %v698
      %v1748 = vpop.f32.mrb[0].mxu0
      %v1749 = vadd.f32 %v1539, %v1748
      %v1750 = vpop.f32.mrb[0].mxu0
      %v1751 = vadd.f32 %v1543, %v1750
      %1752 = vmatprep.mubr.f32.mxu0 0.0
      %1753 = vmatmul.mubr.f32.gmra.mrb[0].mxu0 %v701
      %v1754 = vpop.f32.mrb[0].mxu0
      %v1755 = vadd.f32 %v1539, %v1754
      %v1756 = vpop.f32.mrb[0].mxu0
      %v1757 = vadd.f32 %v1543, %v1756
      %1758 = vmatprep.mubr.f32.mxu0 0.0
      %1759 = vmatmul.mubr.f32.gmra.mrb[0].mxu0 %v704
      %v1760 = vpop.f32.mrb[0].mxu0
      %v1761 = vadd.f32 %v1539, %v1760
      %v1762 = vpop.f32.mrb[0].mxu0
      %v1763 = vadd.f32 %v1543, %v1762
      %1764 = vmatprep.mubr.f32.mxu0 0.0
      %1765 = vmatmul.mubr.f32.gmra.mrb[0].mxu0 %v707
      %v1766 = vpop.f32.mrb[0].mxu0
      %v1767 = vadd.f32 %v1539, %v1766
      %v1768 = vpop.f32.mrb[0].mxu0
      %v1769 = vadd.f32 %v1543, %v1768
      %1770 = vmatprep.mubr.f32.mxu0 0.0
      %1771 = vmatmul.mubr.f32.gmra.mrb[0].mxu0 %v710
      %v1772 = vpop.f32.mrb[0].mxu0
      %v1773 = vadd.f32 %v1539, %v1772
      %v1774 = vpop.f32.mrb[0].mxu0
      %v1775 = vadd.f32 %v1543, %v1774
      %1776 = vmatprep.mubr.f32.mxu0 0.0
      %1777 = vmatmul.mubr.f32.gmra.mrb[0].mxu0 %v713
      %v1778 = vpop.f32.mrb[0].mxu0
      %v1779 = vadd.f32 %v1539, %v1778
      %v1780 = vpop.f32.mrb[0].mxu0
      %v1781 = vadd.f32 %v1543, %v1780
      %1782 = vmatprep.mubr.f32.mxu0 0.0
      %1783 = vmatmul.mubr.f32.gmra.mrb[0].mxu0 %v716
      %v1784 = vpop.f32.mrb[0].mxu0
      %v1785 = vadd.f32 %v1539, %v1784
      %v1786 = vpop.f32.mrb[0].mxu0
      %v1787 = vadd.f32 %v1543, %v1786
      %1788 = vmatprep.mubr.f32.mxu0 0.0
      %1789 = vmatmul.mubr.f32.gmra.mrb[0].mxu0 %v719
      %v1790 = vpop.f32.mrb[0].mxu0
      %v1791 = vadd.f32 %v1539, %v1790
      %v1792 = vpop.f32.mrb[0].mxu0
      %v1793 = vadd.f32 %v1543, %v1792
      %1794 = vmatprep.mubr.f32.mxu0 0.0
      %1795 = vmatmul.mubr.f32.gmra.mrb[0].mxu0 %v722
      %v1796 = vpop.f32.mrb[0].mxu0
      %v1797 = vadd.f32 %v1539, %v1796
      %v1798 = vpop.f32.mrb[0].mxu0
      %v1799 = vadd.f32 %v1543, %v1798
      %1800 = vmatprep.mubr.f32.mxu0 0.0
      %1801 = vmatmul.mubr.f32.gmra.mrb[0].mxu0 %v725
      %v1802 = vpop.f32.mrb[0].mxu0
      %v1803 = vadd.f32 %v1539, %v1802
      %v1804 = vpop.f32.mrb[0].mxu0
      %v1805 = vadd.f32 %v1543, %v1804
      %1806 = vmatprep.mubr.f32.mxu0 0.0
      %1807 = vmatmul.mubr.f32.gmra.mrb[0].mxu0 %v728
      %v1808 = vpop.f32.mrb[0].mxu0
      %v1809 = vadd.f32 %v1539, %v1808
      %v1810 = vpop.f32.mrb[0].mxu0
      %v1811 = vadd.f32 %v1543, %v1810
      %1812 = vmatprep.mubr.f32.mxu0 0.0
      %1813 = vmatmul.mubr.f32.gmra.mrb[0].mxu0 %v731
      %v1814 = vpop.f32.mrb[0].mxu0
      %v1815 = vadd.f32 %v1539, %v1814
      %v1816 = vpop.f32.mrb[0].mxu0
      %v1817 = vadd.f32 %v1543, %v1816
      %1818 = vmatprep.mubr.f32.mxu0 0.0
      %1819 = vmatmul.mubr.f32.gmra.mrb[0].mxu0 %v734
      %v1820 = vpop.f32.mrb[0].mxu0
      %v1821 = vadd.f32 %v1539, %v1820
      %v1822 = vpop.f32.mrb[0].mxu0
      %v1823 = vadd.f32 %v1543, %v1822
      %1824 = vdwg.mxu0
      %1825 = vmatprep.subr.mxu0 %v1521
      %1826 = vmatpush1.msra.mxu0 %v1520
      %1827 = vmatprep.subr.mxu0 %v1525
      %1828 = vmatpush1.msra.mxu0 %v1524
      %1829 = vmatprep.subr.mxu0 %v1529
      %1830 = vmatpush1.msra.mxu0 %v1528
      %1831 = vmatprep.subr.mxu0 %v1566
      %1832 = vmatpush1.msra.mxu0 %v1563
      %1833 = vmatprep.subr.mxu0 0.0
      %1834 = vmatpush1.msra.mxu0 0.0
      %1835 = vmatprep.subr.mxu0 0.0
      %1836 = vmatpush1.msra.mxu0 0.0
      %1837 = vmatprep.subr.mxu0 0.0
      %1838 = vmatpush1.msra.mxu0 0.0
      %1839 = vmatprep.subr.mxu0 0.0
      %1840 = vmatpush1.msra.mxu0 0.0
      %1841 = vmatprep.subr.mxu0 0.0
      %1842 = vmatpush1.msra.mxu0 0.0
      %1843 = vmatprep.subr.mxu0 0.0
      %1844 = vmatpush1.msra.mxu0 0.0
      %1845 = vmatprep.subr.mxu0 0.0
      %1846 = vmatpush1.msra.mxu0 0.0
      %1847 = vmatprep.subr.mxu0 0.0
      %1848 = vmatpush1.msra.mxu0 0.0
      %1849 = vmatprep.subr.mxu0 0.0
      %1850 = vmatpush1.msra.mxu0 0.0
      %1851 = vmatprep.subr.mxu0 0.0
      %1852 = vmatpush1.msra.mxu0 0.0
      %1853 = vmatprep.subr.mxu0 0.0
      %1854 = vmatpush1.msra.mxu0 0.0
      %1855 = vmatprep.subr.mxu0 0.0
      %1856 = vmatpush1.msra.mxu0 0.0
      %1857 = vmatprep.subr.mxu0 0.0
      %1858 = vmatpush1.msra.mxu0 0.0
      %1859 = vmatprep.subr.mxu0 0.0
      %1860 = vmatpush1.msra.mxu0 0.0
      %1861 = vmatprep.subr.mxu0 0.0
      %1862 = vmatpush1.msra.mxu0 0.0
      %1863 = vmatprep.subr.mxu0 0.0
      %1864 = vmatpush1.msra.mxu0 0.0
      %1865 = vmatprep.subr.mxu0 0.0
      %1866 = vmatpush1.msra.mxu0 0.0
      %1867 = vmatprep.subr.mxu0 0.0
      %1868 = vmatpush1.msra.mxu0 0.0
      %1869 = vmatprep.subr.mxu0 0.0
      %1870 = vmatpush1.msra.mxu0 0.0
      %1871 = vmatprep.subr.mxu0 0.0
      %1872 = vmatpush1.msra.mxu0 0.0
      %1873 = vmatprep.subr.mxu0 0.0
      %1874 = vmatpush1.msra.mxu0 0.0
      %1875 = vmatprep.subr.mxu0 0.0
      %1876 = vmatpush1.msra.mxu0 0.0
      %1877 = vmatprep.subr.mxu0 0.0
      %1878 = vmatpush1.msra.mxu0 0.0
      %1879 = vmatprep.subr.mxu0 0.0
      %1880 = vmatpush1.msra.mxu0 0.0
      %1881 = vmatprep.subr.mxu0 0.0
      %1882 = vmatpush1.msra.mxu0 0.0
      %1883 = vmatprep.subr.mxu0 0.0
      %1884 = vmatpush1.msra.mxu0 0.0
      %1885 = vmatprep.subr.mxu0 0.0
      %1886 = vmatpush1.msra.mxu0 0.0
      %1887 = vmatprep.subr.mxu0 0.0
      %1888 = vmatpush1.msra.mxu0 0.0
      %1889 = vmatprep.mubr.f32.mxu0 0.0
      %1890 = vmatmul.mubr.f32.gmra.mrb[0].mxu0 %v641
      %v1891 = vpop.f32.mrb[0].mxu0
      %v1892 = vadd.f32 %v1547, %v1891
      %v1893 = vpop.f32.mrb[0].mxu0
      %v1894 = vadd.f32 %v1551, %v1893
      %1895 = vmatprep.mubr.f32.mxu0 0.0
      %1896 = vmatmul.mubr.f32.gmra.mrb[0].mxu0 %v644
      %v1897 = vpop.f32.mrb[0].mxu0
      %v1898 = vadd.f32 %v1547, %v1897
      %v1899 = vpop.f32.mrb[0].mxu0
      %v1900 = vadd.f32 %v1551, %v1899
      %1901 = vmatprep.mubr.f32.mxu0 0.0
      %1902 = vmatmul.mubr.f32.gmra.mrb[0].mxu0 %v647
      %v1903 = vpop.f32.mrb[0].mxu0
      %v1904 = vadd.f32 %v1547, %v1903
      %v1905 = vpop.f32.mrb[0].mxu0
      %v1906 = vadd.f32 %v1551, %v1905
      %1907 = vmatprep.mubr.f32.mxu0 0.0
      %1908 = vmatmul.mubr.f32.gmra.mrb[0].mxu0 %v650
      %v1909 = vpop.f32.mrb[0].mxu0
      %v1910 = vadd.f32 %v1547, %v1909
      %v1911 = vpop.f32.mrb[0].mxu0
      %v1912 = vadd.f32 %v1551, %v1911
      %1913 = vmatprep.mubr.f32.mxu0 0.0
      %1914 = vmatmul.mubr.f32.gmra.mrb[0].mxu0 %v653
      %v1915 = vpop.f32.mrb[0].mxu0
      %v1916 = vadd.f32 %v1547, %v1915
      %v1917 = vpop.f32.mrb[0].mxu0
      %v1918 = vadd.f32 %v1551, %v1917
      %1919 = vmatprep.mubr.f32.mxu0 0.0
      %1920 = vmatmul.mubr.f32.gmra.mrb[0].mxu0 %v656
      %v1921 = vpop.f32.mrb[0].mxu0
      %v1922 = vadd.f32 %v1547, %v1921
      %v1923 = vpop.f32.mrb[0].mxu0
      %v1924 = vadd.f32 %v1551, %v1923
      %1925 = vmatprep.mubr.f32.mxu0 0.0
      %1926 = vmatmul.mubr.f32.gmra.mrb[0].mxu0 %v659
      %v1927 = vpop.f32.mrb[0].mxu0
      %v1928 = vadd.f32 %v1547, %v1927
      %v1929 = vpop.f32.mrb[0].mxu0
      %v1930 = vadd.f32 %v1551, %v1929
      %1931 = vmatprep.mubr.f32.mxu0 0.0
      %1932 = vmatmul.mubr.f32.gmra.mrb[0].mxu0 %v662
      %v1933 = vpop.f32.mrb[0].mxu0
      %v1934 = vadd.f32 %v1547, %v1933
      %v1935 = vpop.f32.mrb[0].mxu0
      %v1936 = vadd.f32 %v1551, %v1935
      %1937 = vmatprep.mubr.f32.mxu0 0.0
      %1938 = vmatmul.mubr.f32.gmra.mrb[0].mxu0 %v665
      %v1939 = vpop.f32.mrb[0].mxu0
      %v1940 = vadd.f32 %v1547, %v1939
      %v1941 = vpop.f32.mrb[0].mxu0
      %v1942 = vadd.f32 %v1551, %v1941
      %1943 = vmatprep.mubr.f32.mxu0 0.0
      %1944 = vmatmul.mubr.f32.gmra.mrb[0].mxu0 %v668
      %v1945 = vpop.f32.mrb[0].mxu0
      %v1946 = vadd.f32 %v1547, %v1945
      %v1947 = vpop.f32.mrb[0].mxu0
      %v1948 = vadd.f32 %v1551, %v1947
      %1949 = vmatprep.mubr.f32.mxu0 0.0
      %1950 = vmatmul.mubr.f32.gmra.mrb[0].mxu0 %v671
      %v1951 = vpop.f32.mrb[0].mxu0
      %v1952 = vadd.f32 %v1547, %v1951
      %v1953 = vpop.f32.mrb[0].mxu0
      %v1954 = vadd.f32 %v1551, %v1953
      %1955 = vmatprep.mubr.f32.mxu0 0.0
      %1956 = vmatmul.mubr.f32.gmra.mrb[0].mxu0 %v674
      %v1957 = vpop.f32.mrb[0].mxu0
      %v1958 = vadd.f32 %v1547, %v1957
      %v1959 = vpop.f32.mrb[0].mxu0
      %v1960 = vadd.f32 %v1551, %v1959
      %1961 = vmatprep.mubr.f32.mxu0 0.0
      %1962 = vmatmul.mubr.f32.gmra.mrb[0].mxu0 %v677
      %v1963 = vpop.f32.mrb[0].mxu0
      %v1964 = vadd.f32 %v1547, %v1963
      %v1965 = vpop.f32.mrb[0].mxu0
      %v1966 = vadd.f32 %v1551, %v1965
      %1967 = vmatprep.mubr.f32.mxu0 0.0
      %1968 = vmatmul.mubr.f32.gmra.mrb[0].mxu0 %v680
      %v1969 = vpop.f32.mrb[0].mxu0
      %v1970 = vadd.f32 %v1547, %v1969
      %v1971 = vpop.f32.mrb[0].mxu0
      %v1972 = vadd.f32 %v1551, %v1971
      %1973 = vmatprep.mubr.f32.mxu0 0.0
      %1974 = vmatmul.mubr.f32.gmra.mrb[0].mxu0 %v683
      %v1975 = vpop.f32.mrb[0].mxu0
      %v1976 = vadd.f32 %v1547, %v1975
      %v1977 = vpop.f32.mrb[0].mxu0
      %v1978 = vadd.f32 %v1551, %v1977
      %1979 = vmatprep.mubr.f32.mxu0 0.0
      %1980 = vmatmul.mubr.f32.gmra.mrb[0].mxu0 %v686
      %v1981 = vpop.f32.mrb[0].mxu0
      %v1982 = vadd.f32 %v1547, %v1981
      %v1983 = vpop.f32.mrb[0].mxu0
      %v1984 = vadd.f32 %v1551, %v1983
      %1985 = vmatprep.mubr.f32.mxu0 0.0
      %1986 = vmatmul.mubr.f32.gmra.mrb[0].mxu0 %v689
      %v1987 = vpop.f32.mrb[0].mxu0
      %v1988 = vadd.f32 %v1547, %v1987
      %v1989 = vpop.f32.mrb[0].mxu0
      %v1990 = vadd.f32 %v1551, %v1989
      %1991 = vmatprep.mubr.f32.mxu0 0.0
      %1992 = vmatmul.mubr.f32.gmra.mrb[0].mxu0 %v692
      %v1993 = vpop.f32.mrb[0].mxu0
      %v1994 = vadd.f32 %v1547, %v1993
      %v1995 = vpop.f32.mrb[0].mxu0
      %v1996 = vadd.f32 %v1551, %v1995
      %1997 = vmatprep.mubr.f32.mxu0 0.0
      %1998 = vmatmul.mubr.f32.gmra.mrb[0].mxu0 %v695
      %v1999 = vpop.f32.mrb[0].mxu0
      %v2000 = vadd.f32 %v1547, %v1999
      %v2001 = vpop.f32.mrb[0].mxu0
      %v2002 = vadd.f32 %v1551, %v2001
      %2003 = vmatprep.mubr.f32.mxu0 0.0
      %2004 = vmatmul.mubr.f32.gmra.mrb[0].mxu0 %v698
      %v2005 = vpop.f32.mrb[0].mxu0
      %v2006 = vadd.f32 %v1547, %v2005
      %v2007 = vpop.f32.mrb[0].mxu0
      %v2008 = vadd.f32 %v1551, %v2007
      %2009 = vmatprep.mubr.f32.mxu0 0.0
      %2010 = vmatmul.mubr.f32.gmra.mrb[0].mxu0 %v701
      %v2011 = vpop.f32.mrb[0].mxu0
      %v2012 = vadd.f32 %v1547, %v2011
      %v2013 = vpop.f32.mrb[0].mxu0
      %v2014 = vadd.f32 %v1551, %v2013
      %2015 = vmatprep.mubr.f32.mxu0 0.0
      %2016 = vmatmul.mubr.f32.gmra.mrb[0].mxu0 %v704
      %v2017 = vpop.f32.mrb[0].mxu0
      %v2018 = vadd.f32 %v1547, %v2017
      %v2019 = vpop.f32.mrb[0].mxu0
      %v2020 = vadd.f32 %v1551, %v2019
      %2021 = vmatprep.mubr.f32.mxu0 0.0
      %2022 = vmatmul.mubr.f32.gmra.mrb[0].mxu0 %v707
      %v2023 = vpop.f32.mrb[0].mxu0
      %v2024 = vadd.f32 %v1547, %v2023
      %v2025 = vpop.f32.mrb[0].mxu0
      %v2026 = vadd.f32 %v1551, %v2025
      %2027 = vmatprep.mubr.f32.mxu0 0.0
      %2028 = vmatmul.mubr.f32.gmra.mrb[0].mxu0 %v710
      %v2029 = vpop.f32.mrb[0].mxu0
      %v2030 = vadd.f32 %v1547, %v2029
      %v2031 = vpop.f32.mrb[0].mxu0
      %v2032 = vadd.f32 %v1551, %v2031
      %2033 = vmatprep.mubr.f32.mxu0 0.0
      %2034 = vmatmul.mubr.f32.gmra.mrb[0].mxu0 %v713
      %v2035 = vpop.f32.mrb[0].mxu0
      %v2036 = vadd.f32 %v1547, %v2035
      %v2037 = vpop.f32.mrb[0].mxu0
      %v2038 = vadd.f32 %v1551, %v2037
      %2039 = vmatprep.mubr.f32.mxu0 0.0
      %2040 = vmatmul.mubr.f32.gmra.mrb[0].mxu0 %v716
      %v2041 = vpop.f32.mrb[0].mxu0
      %v2042 = vadd.f32 %v1547, %v2041
      %v2043 = vpop.f32.mrb[0].mxu0
      %v2044 = vadd.f32 %v1551, %v2043
      %2045 = vmatprep.mubr.f32.mxu0 0.0
      %2046 = vmatmul.mubr.f32.gmra.mrb[0].mxu0 %v719
      %v2047 = vpop.f32.mrb[0].mxu0
      %v2048 = vadd.f32 %v1547, %v2047
      %v2049 = vpop.f32.mrb[0].mxu0
      %v2050 = vadd.f32 %v1551, %v2049
      %2051 = vmatprep.mubr.f32.mxu0 0.0
      %2052 = vmatmul.mubr.f32.gmra.mrb[0].mxu0 %v722
      %v2053 = vpop.f32.mrb[0].mxu0
      %v2054 = vadd.f32 %v1547, %v2053
      %v2055 = vpop.f32.mrb[0].mxu0
      %v2056 = vadd.f32 %v1551, %v2055
      %2057 = vmatprep.mubr.f32.mxu0 0.0
      %2058 = vmatmul.mubr.f32.gmra.mrb[0].mxu0 %v725
      %v2059 = vpop.f32.mrb[0].mxu0
      %v2060 = vadd.f32 %v1547, %v2059
      %v2061 = vpop.f32.mrb[0].mxu0
      %v2062 = vadd.f32 %v1551, %v2061
      %2063 = vmatprep.mubr.f32.mxu0 0.0
      %2064 = vmatmul.mubr.f32.gmra.mrb[0].mxu0 %v728
      %v2065 = vpop.f32.mrb[0].mxu0
      %v2066 = vadd.f32 %v1547, %v2065
      %v2067 = vpop.f32.mrb[0].mxu0
      %v2068 = vadd.f32 %v1551, %v2067
      %2069 = vmatprep.mubr.f32.mxu0 0.0
      %2070 = vmatmul.mubr.f32.gmra.mrb[0].mxu0 %v731
      %v2071 = vpop.f32.mrb[0].mxu0
      %v2072 = vadd.f32 %v1547, %v2071
      %v2073 = vpop.f32.mrb[0].mxu0
      %v2074 = vadd.f32 %v1551, %v2073
      %2075 = vmatprep.mubr.f32.mxu0 0.0
      %2076 = vmatmul.mubr.f32.gmra.mrb[0].mxu0 %v734
      %v2077 = vpop.f32.mrb[0].mxu0
      %v2078 = vadd.f32 %v1547, %v2077
      %v2079 = vpop.f32.mrb[0].mxu0
      %v2080 = vadd.f32 %v1551, %v2079
      %2081 = vdwg.mxu0
      %v2082 = vmul.f32 %v1486, %v1635
      %v2083 = vmul.f32 %v1487, %v1641
      %v2084 = vmul.f32 %v1488, %v1647
      %v2085 = vmul.f32 %v1489, %v1653
      %v2086 = vmul.f32 %v1490, %v1659
      %v2087 = vmul.f32 %v1491, %v1665
      %v2088 = vmul.f32 %v1492, %v1671
      %v2089 = vmul.f32 %v1493, %v1677
      %v2090 = vmul.f32 %v1494, %v1683
      %v2091 = vmul.f32 %v1495, %v1689
      %v2092 = vmul.f32 %v1496, %v1695
      %v2093 = vmul.f32 %v1497, %v1701
      %v2094 = vmul.f32 %v1498, %v1707
      %v2095 = vmul.f32 %v1499, %v1713
      %v2096 = vmul.f32 %v1500, %v1719
      %v2097 = vmul.f32 %v1501, %v1725
      %v2098 = vmul.f32 %v1502, %v1731
      %v2099 = vmul.f32 %v1503, %v1737
      %v2100 = vmul.f32 %v1504, %v1743
      %v2101 = vmul.f32 %v1505, %v1749
      %v2102 = vmul.f32 %v1506, %v1755
      %v2103 = vmul.f32 %v1507, %v1761
      %v2104 = vmul.f32 %v1508, %v1767
      %v2105 = vmul.f32 %v1509, %v1773
      %v2106 = vmul.f32 %v1510, %v1779
      %v2107 = vmul.f32 %v1511, %v1785
      %v2108 = vmul.f32 %v1512, %v1791
      %v2109 = vmul.f32 %v1513, %v1797
      %v2110 = vmul.f32 %v1514, %v1803
      %v2111 = vmul.f32 %v1515, %v1809
      %v2112 = vmul.f32 %v1516, %v1815
      %v2113 = vmul.f32 %v1517, %v1821
      %v2114 = vadd.f32 %v2082, %v1637
      %v2115 = vadd.f32 %v2083, %v1643
      %v2116 = vadd.f32 %v2084, %v1649
      %v2117 = vadd.f32 %v2085, %v1655
      %v2118 = vadd.f32 %v2086, %v1661
      %v2119 = vadd.f32 %v2087, %v1667
      %v2120 = vadd.f32 %v2088, %v1673
      %v2121 = vadd.f32 %v2089, %v1679
      %v2122 = vadd.f32 %v2090, %v1685
      %v2123 = vadd.f32 %v2091, %v1691
      %v2124 = vadd.f32 %v2092, %v1697
      %v2125 = vadd.f32 %v2093, %v1703
      %v2126 = vadd.f32 %v2094, %v1709
      %v2127 = vadd.f32 %v2095, %v1715
      %v2128 = vadd.f32 %v2096, %v1721
      %v2129 = vadd.f32 %v2097, %v1727
      %v2130 = vadd.f32 %v2098, %v1733
      %v2131 = vadd.f32 %v2099, %v1739
      %v2132 = vadd.f32 %v2100, %v1745
      %v2133 = vadd.f32 %v2101, %v1751
      %v2134 = vadd.f32 %v2102, %v1757
      %v2135 = vadd.f32 %v2103, %v1763
      %v2136 = vadd.f32 %v2104, %v1769
      %v2137 = vadd.f32 %v2105, %v1775
      %v2138 = vadd.f32 %v2106, %v1781
      %v2139 = vadd.f32 %v2107, %v1787
      %v2140 = vadd.f32 %v2108, %v1793
      %v2141 = vadd.f32 %v2109, %v1799
      %v2142 = vadd.f32 %v2110, %v1805
      %v2143 = vadd.f32 %v2111, %v1811
      %v2144 = vadd.f32 %v2112, %v1817
      %v2145 = vadd.f32 %v2113, %v1823
      %v2146 = vmax.f32 %v2114, 0.0
      %v2147 = vmax.f32 %v2115, 0.0
      %v2148 = vmax.f32 %v2116, 0.0
      %v2149 = vmax.f32 %v2117, 0.0
      %v2150 = vmax.f32 %v2118, 0.0
      %v2151 = vmax.f32 %v2119, 0.0
      %v2152 = vmax.f32 %v2120, 0.0
      %v2153 = vmax.f32 %v2121, 0.0
      %v2154 = vmax.f32 %v2122, 0.0
      %v2155 = vmax.f32 %v2123, 0.0
      %v2156 = vmax.f32 %v2124, 0.0
      %v2157 = vmax.f32 %v2125, 0.0
      %v2158 = vmax.f32 %v2126, 0.0
      %v2159 = vmax.f32 %v2127, 0.0
      %v2160 = vmax.f32 %v2128, 0.0
      %v2161 = vmax.f32 %v2129, 0.0
      %v2162 = vmax.f32 %v2130, 0.0
      %v2163 = vmax.f32 %v2131, 0.0
      %v2164 = vmax.f32 %v2132, 0.0
      %v2165 = vmax.f32 %v2133, 0.0
      %v2166 = vmax.f32 %v2134, 0.0
      %v2167 = vmax.f32 %v2135, 0.0
      %v2168 = vmax.f32 %v2136, 0.0
      %v2169 = vmax.f32 %v2137, 0.0
      %v2170 = vmax.f32 %v2138, 0.0
      %v2171 = vmax.f32 %v2139, 0.0
      %v2172 = vmax.f32 %v2140, 0.0
      %v2173 = vmax.f32 %v2141, 0.0
      %v2174 = vmax.f32 %v2142, 0.0
      %v2175 = vmax.f32 %v2143, 0.0
      %v2176 = vmax.f32 %v2144, 0.0
      %v2177 = vmax.f32 %v2145, 0.0
      %v2178 = vmul.f32 %v555, %v1892
      %v2179 = vmul.f32 %v556, %v1898
      %v2180 = vmul.f32 %v557, %v1904
      %v2181 = vmul.f32 %v558, %v1910
      %v2182 = vmul.f32 %v559, %v1916
      %v2183 = vmul.f32 %v560, %v1922
      %v2184 = vmul.f32 %v561, %v1928
      %v2185 = vmul.f32 %v562, %v1934
      %v2186 = vmul.f32 %v563, %v1940
      %v2187 = vmul.f32 %v564, %v1946
      %v2188 = vmul.f32 %v565, %v1952
      %v2189 = vmul.f32 %v566, %v1958
      %v2190 = vmul.f32 %v567, %v1964
      %v2191 = vmul.f32 %v568, %v1970
      %v2192 = vmul.f32 %v569, %v1976
      %v2193 = vmul.f32 %v570, %v1982
      %v2194 = vmul.f32 %v571, %v1988
      %v2195 = vmul.f32 %v572, %v1994
      %v2196 = vmul.f32 %v573, %v2000
      %v2197 = vmul.f32 %v574, %v2006
      %v2198 = vmul.f32 %v575, %v2012
      %v2199 = vmul.f32 %v576, %v2018
      %v2200 = vmul.f32 %v577, %v2024
      %v2201 = vmul.f32 %v578, %v2030
      %v2202 = vmul.f32 %v579, %v2036
      %v2203 = vmul.f32 %v580, %v2042
      %v2204 = vmul.f32 %v581, %v2048
      %v2205 = vmul.f32 %v582, %v2054
      %v2206 = vmul.f32 %v583, %v2060
      %v2207 = vmul.f32 %v584, %v2066
      %v2208 = vmul.f32 %v585, %v2072
      %v2209 = vmul.f32 %v586, %v2078
      %v2210 = vadd.f32 %v2178, %v1894
      %v2211 = vadd.f32 %v2179, %v1900
      %v2212 = vadd.f32 %v2180, %v1906
      %v2213 = vadd.f32 %v2181, %v1912
      %v2214 = vadd.f32 %v2182, %v1918
      %v2215 = vadd.f32 %v2183, %v1924
      %v2216 = vadd.f32 %v2184, %v1930
      %v2217 = vadd.f32 %v2185, %v1936
      %v2218 = vadd.f32 %v2186, %v1942
      %v2219 = vadd.f32 %v2187, %v1948
      %v2220 = vadd.f32 %v2188, %v1954
      %v2221 = vadd.f32 %v2189, %v1960
      %v2222 = vadd.f32 %v2190, %v1966
      %v2223 = vadd.f32 %v2191, %v1972
      %v2224 = vadd.f32 %v2192, %v1978
      %v2225 = vadd.f32 %v2193, %v1984
      %v2226 = vadd.f32 %v2194, %v1990
      %v2227 = vadd.f32 %v2195, %v1996
      %v2228 = vadd.f32 %v2196, %v2002
      %v2229 = vadd.f32 %v2197, %v2008
      %v2230 = vadd.f32 %v2198, %v2014
      %v2231 = vadd.f32 %v2199, %v2020
      %v2232 = vadd.f32 %v2200, %v2026
      %v2233 = vadd.f32 %v2201, %v2032
      %v2234 = vadd.f32 %v2202, %v2038
      %v2235 = vadd.f32 %v2203, %v2044
      %v2236 = vadd.f32 %v2204, %v2050
      %v2237 = vadd.f32 %v2205, %v2056
      %v2238 = vadd.f32 %v2206, %v2062
      %v2239 = vadd.f32 %v2207, %v2068
      %v2240 = vadd.f32 %v2208, %v2074
      %v2241 = vadd.f32 %v2209, %v2080
      %v2242 = vmax.f32 %v2210, 0.0
      %v2243 = vmax.f32 %v2211, 0.0
      %v2244 = vmax.f32 %v2212, 0.0
      %v2245 = vmax.f32 %v2213, 0.0
      %v2246 = vmax.f32 %v2214, 0.0
      %v2247 = vmax.f32 %v2215, 0.0
      %v2248 = vmax.f32 %v2216, 0.0
      %v2249 = vmax.f32 %v2217, 0.0
      %v2250 = vmax.f32 %v2218, 0.0
      %v2251 = vmax.f32 %v2219, 0.0
      %v2252 = vmax.f32 %v2220, 0.0
      %v2253 = vmax.f32 %v2221, 0.0
      %v2254 = vmax.f32 %v2222, 0.0
      %v2255 = vmax.f32 %v2223, 0.0
      %v2256 = vmax.f32 %v2224, 0.0
      %v2257 = vmax.f32 %v2225, 0.0
      %v2258 = vmax.f32 %v2226, 0.0
      %v2259 = vmax.f32 %v2227, 0.0
      %v2260 = vmax.f32 %v2228, 0.0
      %v2261 = vmax.f32 %v2229, 0.0
      %v2262 = vmax.f32 %v2230, 0.0
      %v2263 = vmax.f32 %v2231, 0.0
      %v2264 = vmax.f32 %v2232, 0.0
      %v2265 = vmax.f32 %v2233, 0.0
      %v2266 = vmax.f32 %v2234, 0.0
      %v2267 = vmax.f32 %v2235, 0.0
      %v2268 = vmax.f32 %v2236, 0.0
      %v2269 = vmax.f32 %v2237, 0.0
      %v2270 = vmax.f32 %v2238, 0.0
      %v2271 = vmax.f32 %v2239, 0.0
      %v2272 = vmax.f32 %v2240, 0.0
      %v2273 = vmax.f32 %v2241, 0.0
      %v2274 = vpack.c.bf16 %v2147, %v2146
      %v2275 = vpack.c.bf16 %v2243, %v2242
      %v2276 = vpack.c.bf16 %v2149, %v2148
      %v2277 = vpack.c.bf16 %v2245, %v2244
      %v2278 = vpack.c.bf16 %v2151, %v2150
      %v2279 = vpack.c.bf16 %v2247, %v2246
      %v2280 = vpack.c.bf16 %v2153, %v2152
      %v2281 = vpack.c.bf16 %v2249, %v2248
      %v2282 = vpack.c.bf16 %v2155, %v2154
      %v2283 = vpack.c.bf16 %v2251, %v2250
      %v2284 = vpack.c.bf16 %v2157, %v2156
      %v2285 = vpack.c.bf16 %v2253, %v2252
      %v2286 = vpack.c.bf16 %v2159, %v2158
      %v2287 = vpack.c.bf16 %v2255, %v2254
      %v2288 = vpack.c.bf16 %v2161, %v2160
      %v2289 = vpack.c.bf16 %v2257, %v2256
      %v2290 = vpack.c.bf16 %v2163, %v2162
      %v2291 = vpack.c.bf16 %v2259, %v2258
      %v2292 = vpack.c.bf16 %v2165, %v2164
      %v2293 = vpack.c.bf16 %v2261, %v2260
      %v2294 = vpack.c.bf16 %v2167, %v2166
      %v2295 = vpack.c.bf16 %v2263, %v2262
      %v2296 = vpack.c.bf16 %v2169, %v2168
      %v2297 = vpack.c.bf16 %v2265, %v2264
      %v2298 = vpack.c.bf16 %v2171, %v2170
      %v2299 = vpack.c.bf16 %v2267, %v2266
      %v2300 = vpack.c.bf16 %v2173, %v2172
      %v2301 = vpack.c.bf16 %v2269, %v2268
      %v2302 = vpack.c.bf16 %v2175, %v2174
      %v2303 = vpack.c.bf16 %v2271, %v2270
      %v2304 = vpack.c.bf16 %v2177, %v2176
      %v2305 = vpack.c.bf16 %v2273, %v2272
      %v2306 = vld [vmem:[%s8] sm:$0xf]
      %v2307 = vld [vmem:[%s8 + $0x4] sm:$0xf]
      %v2308 = vld [vmem:[%s8 + $0x8] sm:$0xf]
      %v2309 = vld [vmem:[%s8 + $0xc] sm:$0xf]
      %v2310 = vld [vmem:[%s8 + $0x10] sm:$0xf]
      %v2311 = vld [vmem:[%s8 + $0x14] sm:$0xf]
      %v2312 = vld [vmem:[%s8 + $0x18] sm:$0xf]
      %v2313 = vld [vmem:[%s8 + $0x1c] sm:$0xf]
      %v2314 = vld [vmem:[%s8 + $0x20] sm:$0xf]
      %v2315 = vld [vmem:[%s8 + $0x24] sm:$0xf]
      %v2316 = vld [vmem:[%s8 + $0x28] sm:$0xf]
      %v2317 = vld [vmem:[%s8 + $0x2c] sm:$0xf]
      %v2318 = vld [vmem:[%s8 + $0x30] sm:$0xf]
      %v2319 = vld [vmem:[%s8 + $0x34] sm:$0xf]
      %v2320 = vld [vmem:[%s8 + $0x38] sm:$0xf]
      %v2321 = vld [vmem:[%s8 + $0x3c] sm:$0xf]
      %v2322 = vld [vmem:[%s8 + $0x40] sm:$0xf]
      %v2323 = vld [vmem:[%s8 + $0x44] sm:$0xf]
      %v2324 = vld [vmem:[%s8 + $0x48] sm:$0xf]
      %v2325 = vld [vmem:[%s8 + $0x4c] sm:$0xf]
      %v2326 = vld [vmem:[%s8 + $0x50] sm:$0xf]
      %v2327 = vld [vmem:[%s8 + $0x54] sm:$0xf]
      %v2328 = vld [vmem:[%s8 + $0x58] sm:$0xf]
      %v2329 = vld [vmem:[%s8 + $0x5c] sm:$0xf]
      %v2330 = vld [vmem:[%s8 + $0x60] sm:$0xf]
      %v2331 = vld [vmem:[%s8 + $0x64] sm:$0xf]
      %v2332 = vld [vmem:[%s8 + $0x68] sm:$0xf]
      %v2333 = vld [vmem:[%s8 + $0x6c] sm:$0xf]
      %v2334 = vld [vmem:[%s8 + $0x70] sm:$0xf]
      %v2335 = vld [vmem:[%s8 + $0x74] sm:$0xf]
      %v2336 = vld [vmem:[%s8 + $0x78] sm:$0xf]
      %v2337 = vld [vmem:[%s8 + $0x7c] sm:$0xf]
      %v2338 = vld [vmem:[%s9] sm:$0x1]
      %v2340 = vlaneseq
      %v2341 = vshrl.u32 %v2340, 7
      %v2342 = vsub.s32 0, %v2341
      %v2343 = vrot.slane %v2338, %v2342
      %v2377 = vunpack.c.l.b16 %v2306
      %v2378 = vunpack.c.l.b16 %v2307
      %v2379 = vunpack.c.l.b16 %v2308
      %v2380 = vunpack.c.l.b16 %v2309
      %v2381 = vunpack.c.l.b16 %v2310
      %v2382 = vunpack.c.l.b16 %v2311
      %v2383 = vunpack.c.l.b16 %v2312
      %v2384 = vunpack.c.l.b16 %v2313
      %v2385 = vunpack.c.l.b16 %v2314
      %v2386 = vunpack.c.l.b16 %v2315
      %v2387 = vunpack.c.l.b16 %v2316
      %v2388 = vunpack.c.l.b16 %v2317
      %v2389 = vunpack.c.l.b16 %v2318
      %v2390 = vunpack.c.l.b16 %v2319
      %v2391 = vunpack.c.l.b16 %v2320
      %v2392 = vunpack.c.l.b16 %v2321
      %v2393 = vunpack.c.l.b16 %v2322
      %v2394 = vunpack.c.l.b16 %v2323
      %v2395 = vunpack.c.l.b16 %v2324
      %v2396 = vunpack.c.l.b16 %v2325
      %v2397 = vunpack.c.l.b16 %v2326
      %v2398 = vunpack.c.l.b16 %v2327
      %v2399 = vunpack.c.l.b16 %v2328
      %v2400 = vunpack.c.l.b16 %v2329
      %v2401 = vunpack.c.l.b16 %v2330
      %v2402 = vunpack.c.l.b16 %v2331
      %v2403 = vunpack.c.l.b16 %v2332
      %v2404 = vunpack.c.l.b16 %v2333
      %v2405 = vunpack.c.l.b16 %v2334
      %v2406 = vunpack.c.l.b16 %v2335
      %v2407 = vunpack.c.l.b16 %v2336
      %v2408 = vunpack.c.l.b16 %v2337
      %v2409 = vpack.c.b16 %v2378, %v2377
      %v2410 = vpack.c.b16 %v2380, %v2379
      %v2411 = vpack.c.b16 %v2382, %v2381
      %v2412 = vpack.c.b16 %v2384, %v2383
      %v2413 = vpack.c.b16 %v2386, %v2385
      %v2414 = vpack.c.b16 %v2388, %v2387
      %v2415 = vpack.c.b16 %v2390, %v2389
      %v2416 = vpack.c.b16 %v2392, %v2391
      %v2417 = vpack.c.b16 %v2394, %v2393
      %v2418 = vpack.c.b16 %v2396, %v2395
      %v2419 = vpack.c.b16 %v2398, %v2397
      %v2420 = vpack.c.b16 %v2400, %v2399
      %v2421 = vpack.c.b16 %v2402, %v2401
      %v2422 = vpack.c.b16 %v2404, %v2403
      %v2423 = vpack.c.b16 %v2406, %v2405
      %v2424 = vpack.c.b16 %v2408, %v2407
      %2441 = vmatprep.subr.bf16.mxu0 0
      %2442 = vmatpush1.bf16.msra.mxu0 %v2409
      %2443 = vmatprep.subr.bf16.mxu0 0
      %2444 = vmatpush1.bf16.msra.mxu0 %v2410
      %2445 = vmatprep.subr.bf16.mxu0 0
      %2446 = vmatpush1.bf16.msra.mxu0 %v2411
      %2447 = vmatprep.subr.bf16.mxu0 0
      %2448 = vmatpush1.bf16.msra.mxu0 %v2412
      %2449 = vmatprep.subr.bf16.mxu0 0
      %2450 = vmatpush1.bf16.msra.mxu0 %v2413
      %2451 = vmatprep.subr.bf16.mxu0 0
      %2452 = vmatpush1.bf16.msra.mxu0 %v2414
      %2453 = vmatprep.subr.bf16.mxu0 0
      %2454 = vmatpush1.bf16.msra.mxu0 %v2415
      %2455 = vmatprep.subr.bf16.mxu0 0
      %2456 = vmatpush1.bf16.msra.mxu0 %v2416
      %2457 = vmatprep.subr.bf16.mxu0 0
      %2458 = vmatpush1.bf16.msra.mxu0 %v2417
      %2459 = vmatprep.subr.bf16.mxu0 0
      %2460 = vmatpush1.bf16.msra.mxu0 %v2418
      %2461 = vmatprep.subr.bf16.mxu0 0
      %2462 = vmatpush1.bf16.msra.mxu0 %v2419
      %2463 = vmatprep.subr.bf16.mxu0 0
      %2464 = vmatpush1.bf16.msra.mxu0 %v2420
      %2465 = vmatprep.subr.bf16.mxu0 0
      %2466 = vmatpush1.bf16.msra.mxu0 %v2421
      %2467 = vmatprep.subr.bf16.mxu0 0
      %2468 = vmatpush1.bf16.msra.mxu0 %v2422
      %2469 = vmatprep.subr.bf16.mxu0 0
      %2470 = vmatpush1.bf16.msra.mxu0 %v2423
      %2471 = vmatprep.subr.bf16.mxu0 0
      %2472 = vmatpush1.bf16.msra.mxu0 %v2424
      %2473 = vmatprep.mubr.bf16.mxu0 %v2275
      %2474 = vmatmul.mubr.bf16.gmra.mrb[0].mxu0 %v2274
      %v2475 = vpop.f32.mrb[0].mxu0
      %v2476 = vadd.f32 %v2343, %v2475
      %v2477 = vpop.f32.mrb[0].mxu0
      %v2478 = vpop.f32.mrb[0].mxu0
      %v2479 = vadd.f32 %v2343, %v2478
      %v2480 = vpop.f32.mrb[0].mxu0
      %2481 = vmatprep.mubr.bf16.mxu0 %v2277
      %2482 = vmatmul.mubr.bf16.gmra.mrb[0].mxu0 %v2276
      %v2483 = vpop.f32.mrb[0].mxu0
      %v2484 = vadd.f32 %v2343, %v2483
      %v2485 = vpop.f32.mrb[0].mxu0
      %v2486 = vpop.f32.mrb[0].mxu0
      %v2487 = vadd.f32 %v2343, %v2486
      %v2488 = vpop.f32.mrb[0].mxu0
      %2489 = vmatprep.mubr.bf16.mxu0 %v2279
      %2490 = vmatmul.mubr.bf16.gmra.mrb[0].mxu0 %v2278
      %v2491 = vpop.f32.mrb[0].mxu0
      %v2492 = vadd.f32 %v2343, %v2491
      %v2493 = vpop.f32.mrb[0].mxu0
      %v2494 = vpop.f32.mrb[0].mxu0
      %v2495 = vadd.f32 %v2343, %v2494
      %v2496 = vpop.f32.mrb[0].mxu0
      %2497 = vmatprep.mubr.bf16.mxu0 %v2281
      %2498 = vmatmul.mubr.bf16.gmra.mrb[0].mxu0 %v2280
      %v2499 = vpop.f32.mrb[0].mxu0
      %v2500 = vadd.f32 %v2343, %v2499
      %v2501 = vpop.f32.mrb[0].mxu0
      %v2502 = vpop.f32.mrb[0].mxu0
      %v2503 = vadd.f32 %v2343, %v2502
      %v2504 = vpop.f32.mrb[0].mxu0
      %2505 = vmatprep.mubr.bf16.mxu0 %v2283
      %2506 = vmatmul.mubr.bf16.gmra.mrb[0].mxu0 %v2282
      %v2507 = vpop.f32.mrb[0].mxu0
      %v2508 = vadd.f32 %v2343, %v2507
      %v2509 = vpop.f32.mrb[0].mxu0
      %v2510 = vpop.f32.mrb[0].mxu0
      %v2511 = vadd.f32 %v2343, %v2510
      %v2512 = vpop.f32.mrb[0].mxu0
      %2513 = vmatprep.mubr.bf16.mxu0 %v2285
      %2514 = vmatmul.mubr.bf16.gmra.mrb[0].mxu0 %v2284
      %v2515 = vpop.f32.mrb[0].mxu0
      %v2516 = vadd.f32 %v2343, %v2515
      %v2517 = vpop.f32.mrb[0].mxu0
      %v2518 = vpop.f32.mrb[0].mxu0
      %v2519 = vadd.f32 %v2343, %v2518
      %v2520 = vpop.f32.mrb[0].mxu0
      %2521 = vmatprep.mubr.bf16.mxu0 %v2287
      %2522 = vmatmul.mubr.bf16.gmra.mrb[0].mxu0 %v2286
      %v2523 = vpop.f32.mrb[0].mxu0
      %v2524 = vadd.f32 %v2343, %v2523
      %v2525 = vpop.f32.mrb[0].mxu0
      %v2526 = vpop.f32.mrb[0].mxu0
      %v2527 = vadd.f32 %v2343, %v2526
      %v2528 = vpop.f32.mrb[0].mxu0
      %2529 = vmatprep.mubr.bf16.mxu0 %v2289
      %2530 = vmatmul.mubr.bf16.gmra.mrb[0].mxu0 %v2288
      %v2531 = vpop.f32.mrb[0].mxu0
      %v2532 = vadd.f32 %v2343, %v2531
      %v2533 = vpop.f32.mrb[0].mxu0
      %v2534 = vpop.f32.mrb[0].mxu0
      %v2535 = vadd.f32 %v2343, %v2534
      %v2536 = vpop.f32.mrb[0].mxu0
      %2537 = vmatprep.mubr.bf16.mxu0 %v2291
      %2538 = vmatmul.mubr.bf16.gmra.mrb[0].mxu0 %v2290
      %v2539 = vpop.f32.mrb[0].mxu0
      %v2540 = vadd.f32 %v2343, %v2539
      %v2541 = vpop.f32.mrb[0].mxu0
      %v2542 = vpop.f32.mrb[0].mxu0
      %v2543 = vadd.f32 %v2343, %v2542
      %v2544 = vpop.f32.mrb[0].mxu0
      %2545 = vmatprep.mubr.bf16.mxu0 %v2293
      %2546 = vmatmul.mubr.bf16.gmra.mrb[0].mxu0 %v2292
      %v2547 = vpop.f32.mrb[0].mxu0
      %v2548 = vadd.f32 %v2343, %v2547
      %v2549 = vpop.f32.mrb[0].mxu0
      %v2550 = vpop.f32.mrb[0].mxu0
      %v2551 = vadd.f32 %v2343, %v2550
      %v2552 = vpop.f32.mrb[0].mxu0
      %2553 = vmatprep.mubr.bf16.mxu0 %v2295
      %2554 = vmatmul.mubr.bf16.gmra.mrb[0].mxu0 %v2294
      %v2555 = vpop.f32.mrb[0].mxu0
      %v2556 = vadd.f32 %v2343, %v2555
      %v2557 = vpop.f32.mrb[0].mxu0
      %v2558 = vpop.f32.mrb[0].mxu0
      %v2559 = vadd.f32 %v2343, %v2558
      %v2560 = vpop.f32.mrb[0].mxu0
      %2561 = vmatprep.mubr.bf16.mxu0 %v2297
      %2562 = vmatmul.mubr.bf16.gmra.mrb[0].mxu0 %v2296
      %v2563 = vpop.f32.mrb[0].mxu0
      %v2564 = vadd.f32 %v2343, %v2563
      %v2565 = vpop.f32.mrb[0].mxu0
      %v2566 = vpop.f32.mrb[0].mxu0
      %v2567 = vadd.f32 %v2343, %v2566
      %v2568 = vpop.f32.mrb[0].mxu0
      %2569 = vmatprep.mubr.bf16.mxu0 %v2299
      %2570 = vmatmul.mubr.bf16.gmra.mrb[0].mxu0 %v2298
      %v2571 = vpop.f32.mrb[0].mxu0
      %v2572 = vadd.f32 %v2343, %v2571
      %v2573 = vpop.f32.mrb[0].mxu0
      %v2574 = vpop.f32.mrb[0].mxu0
      %v2575 = vadd.f32 %v2343, %v2574
      %v2576 = vpop.f32.mrb[0].mxu0
      %2577 = vmatprep.mubr.bf16.mxu0 %v2301
      %2578 = vmatmul.mubr.bf16.gmra.mrb[0].mxu0 %v2300
      %v2579 = vpop.f32.mrb[0].mxu0
      %v2580 = vadd.f32 %v2343, %v2579
      %v2581 = vpop.f32.mrb[0].mxu0
      %v2582 = vpop.f32.mrb[0].mxu0
      %v2583 = vadd.f32 %v2343, %v2582
      %v2584 = vpop.f32.mrb[0].mxu0
      %2585 = vmatprep.mubr.bf16.mxu0 %v2303
      %2586 = vmatmul.mubr.bf16.gmra.mrb[0].mxu0 %v2302
      %v2587 = vpop.f32.mrb[0].mxu0
      %v2588 = vadd.f32 %v2343, %v2587
      %v2589 = vpop.f32.mrb[0].mxu0
      %v2590 = vpop.f32.mrb[0].mxu0
      %v2591 = vadd.f32 %v2343, %v2590
      %v2592 = vpop.f32.mrb[0].mxu0
      %2593 = vmatprep.mubr.bf16.mxu0 %v2305
      %2594 = vmatmul.mubr.bf16.gmra.mrb[0].mxu0 %v2304
      %v2595 = vpop.f32.mrb[0].mxu0
      %v2596 = vadd.f32 %v2343, %v2595
      %v2597 = vpop.f32.mrb[0].mxu0
      %v2598 = vpop.f32.mrb[0].mxu0
      %v2599 = vadd.f32 %v2343, %v2598
      %v2600 = vpop.f32.mrb[0].mxu0
      %2601 = vdwg.mxu0
      %2602 = vst [vmem:[%s379] sm:$0xff] %v2476
      %2603 = vst [vmem:[%s379 + $0x8] sm:$0xff] %v2479
      %2604 = vst [vmem:[%s379 + $0x10] sm:$0xff] %v2484
      %2605 = vst [vmem:[%s379 + $0x18] sm:$0xff] %v2487
      %2606 = vst [vmem:[%s379 + $0x20] sm:$0xff] %v2492
      %2607 = vst [vmem:[%s379 + $0x28] sm:$0xff] %v2495
      %2608 = vst [vmem:[%s379 + $0x30] sm:$0xff] %v2500
      %2609 = vst [vmem:[%s379 + $0x38] sm:$0xff] %v2503
      %2610 = vst [vmem:[%s379 + $0x40] sm:$0xff] %v2508
      %2611 = vst [vmem:[%s379 + $0x48] sm:$0xff] %v2511
      %2612 = vst [vmem:[%s379 + $0x50] sm:$0xff] %v2516
      %2613 = vst [vmem:[%s379 + $0x58] sm:$0xff] %v2519
      %2614 = vst [vmem:[%s379 + $0x60] sm:$0xff] %v2524
      %2615 = vst [vmem:[%s379 + $0x68] sm:$0xff] %v2527
      %2616 = vst [vmem:[%s379 + $0x70] sm:$0xff] %v2532
      %2617 = vst [vmem:[%s379 + $0x78] sm:$0xff] %v2535
      %2618 = vst [vmem:[%s379 + $0x80] sm:$0xff] %v2540
      %2619 = vst [vmem:[%s379 + $0x88] sm:$0xff] %v2543
      %2620 = vst [vmem:[%s379 + $0x90] sm:$0xff] %v2548
      %2621 = vst [vmem:[%s379 + $0x98] sm:$0xff] %v2551
      %2622 = vst [vmem:[%s379 + $0xa0] sm:$0xff] %v2556
      %2623 = vst [vmem:[%s379 + $0xa8] sm:$0xff] %v2559
      %2624 = vst [vmem:[%s379 + $0xb0] sm:$0xff] %v2564
      %2625 = vst [vmem:[%s379 + $0xb8] sm:$0xff] %v2567
      %2626 = vst [vmem:[%s379 + $0xc0] sm:$0xff] %v2572
      %2627 = vst [vmem:[%s379 + $0xc8] sm:$0xff] %v2575
      %2628 = vst [vmem:[%s379 + $0xd0] sm:$0xff] %v2580
      %2629 = vst [vmem:[%s379 + $0xd8] sm:$0xff] %v2583
      %2630 = vst [vmem:[%s379 + $0xe0] sm:$0xff] %v2588
      %2631 = vst [vmem:[%s379 + $0xe8] sm:$0xff] %v2591
      %2632 = vst [vmem:[%s379 + $0xf0] sm:$0xff] %v2596
      %2633 = vst [vmem:[%s379 + $0xf8] sm:$0xff] %v2599
      %p2634 = scmp.lt.s32.totalorder %s21, 1
      %s2635 = scalar_select %p2634, %s21, 1
      %s2636 = smul.addr %s2635, 32
      %s2637 = smul.addr %s2636, 8
      %s2638 = scalar_lea.vmem %s10, %s2637
      // Predicated region
      $region61: #{resblk_spade_pallas.1} parent=59 // pred_check
        %p2639 = pneg %p259
      $region62: #{resblk_spade_pallas.1} parent=59 // pred_check_branch
        %2641 = sbr.rel (%p2639) target = $region64
      $region63: #{resblk_spade_pallas.1} parent=59 // pred_region
        _
      $region64: #{resblk_spade_pallas.1} parent=59 // pred_fallthru
        _
    $region60: #{resblk_spade_pallas.1} parent=5 // pred_fallthru
      _
    %p2642 = scmp.le.s32.totalorder 2, %s16
    // Predicated region
    $region65: #{resblk_spade_pallas.1} parent=5 // pred_check
      %p2643 = pneg %p2642
    $region66: #{resblk_spade_pallas.1} parent=5 // pred_check_branch
      %2645 = sbr.rel (%p2643) target = $region68
    $region67: #{resblk_spade_pallas.1} parent=5 // pred_region
      %s2646 = ssub.s32 %s16, 2
      // Predicated region
      $region69: #{resblk_spade_pallas.1} parent=67 // pred_check
        %p2647 = pneg %p265
      $region70: #{resblk_spade_pallas.1} parent=67 // pred_check_branch
        %2649 = sbr.rel (%p2647) target = $region72
      $region71: #{resblk_spade_pallas.1} parent=67 // pred_region
        %p2650 = scmp.lt.s32.totalorder %s22, 1
        %s2651 = scalar_select %p2650, %s22, 1
        %s2652 = smul.addr %s2651, 32
        %s2653 = smul.addr %s2652, 8
        %s2654 = scalar_lea.vmem %s10, %s2653
      $region72: #{resblk_spade_pallas.1} parent=67 // pred_fallthru
        _
    $region68: #{resblk_spade_pallas.1} parent=5 // pred_fallthru
      _
  $region6: #{resblk_spade_pallas.1} parent=0 // loop_footer
    %s20 = sadd.s32 1, %s16
  $region7: #{resblk_spade_pallas.1} parent=0 // loop_footer_branch
    %15 = sbr.rel target = $region3
  $region8: #{resblk_spade_pallas.1} parent=0 // loop_exit
    _

</llo_original>
